<compile_context>
chip_gen: v5e
topology: v5e:2x2
jax: 0.10.0
libtpu: 0.0.40
codegen_flags: <defaults>
</compile_context>

<pallas_src>
from functools import partial

import numpy as np
import jax
import jax.numpy as jnp
from jax.experimental import pallas as pl
from jax.experimental.pallas import tpu as pltpu


# ------------------------------- static dims -------------------------------- #

IN_HW = 32                      # input height/width (required by fc1 = 16*5*5)
K5 = 5                          # conv kernel size
C1, C2 = 6, 16                  # conv1 / conv2 output channels
OH1 = IN_HW - K5 + 1            # 28  conv1 output h/w
PW1 = OH1 // 2                  # 14  pooled h/w after stage 1
OH2 = PW1 - K5 + 1              # 10  conv2 output h/w
PH2 = OH2 // 2                  # 5   pooled h/w after stage 2
F1, F2 = 120, 84                # fc1 / fc2 widths
LP = 128                        # lane padding
BT = 8                          # images per grid step (batch tile)
RPI1 = IN_HW                    # slab rows per image, stage 1 (32)
RPI2 = 16                       # slab rows per image, stage 2 (14 padded to 16)

# packed-slab row offsets (bf16 rows; all multiples of 16 -> bf16-tile aligned)
A_BAND1 = 0
A_SEL1 = A_BAND1 + K5 * IN_HW               # 160
A_BAND2 = A_SEL1 + 2 * BT * RPI2            # 416
A_END = A_BAND2 + K5 * LP                   # 1056
B_SEL2 = 0
B_WF1 = B_SEL2 + 2 * PH2 * BT               # 80
B_WF2 = B_WF1 + K5 * LP                     # 720
B_WF3 = B_WF2 + LP                          # 848
B_END = B_WF3 + LP                          # 976

assert OH1 % 2 == 0 and OH2 % 2 == 0, "even/odd pooling split assumes even conv outputs"
assert BT * RPI1 == 2 * LP, "slab-A packing assumes BT == 8 (sel1 has BT*32 columns)"
assert BT * RPI2 == LP, "slab-B packing assumes BT == 8 (sel2 has BT*16 columns)"


# ------------------------------ fused kernel ------------------------------- #

def _lenet_kernel(x_ref, wa_ref, wb_ref, bias_ref, o_ref):
    f32, bf16 = jnp.float32, jnp.bfloat16
    BT1 = BT * RPI1                             # 256 rows, stage-1 slab
    BT2 = BT * RPI2                             # 128 rows, stage-2 slab

    # static, tile-aligned slices of the packed weight slabs (resident in VMEM)
    band1 = wa_ref[A_BAND1:A_SEL1, :]           # (160, 256)  conv1 bands, even|odd
    sel1 = wa_ref[A_SEL1:A_BAND2, :]            # (256, 256)  merged H-pool-1 select
    band2 = wa_ref[A_BAND2:A_END, :]            # (640, 256)  conv2 bands, kh in K
    sel2 = wb_ref[B_SEL2:B_WF1, :]              # (80, 128)   merged H-pool-2 select
    wf1 = wb_ref[B_WF1:B_WF2, :]                # (640, 128)
    wf2 = wb_ref[B_WF2:B_WF3, :]                # (128, 128)
    wf3 = wb_ref[B_WF3:B_END, :]                # (128, 128)
    bias1 = bias_ref[0:1, :]                    # (1, 128) f32
    bias2 = bias_ref[1:2, :]
    bf1 = bias_ref[2:3, :]
    bf2 = bias_ref[3:4, :]
    bf3 = bias_ref[4:5, :]

    # ---- conv1: ONE MXU matmul (kh folded into K, even/odd fused along N) ----
    x2d = x_ref[...]                                            # (256, 160) bf16
    y1 = jnp.dot(x2d, band1, preferred_element_type=f32)        # (256, 256)
    m1 = jnp.maximum(jnp.maximum(y1[:, :LP], y1[:, LP:]) + bias1, 0.0)   # width pool
    # ---- H-pool 1 + compaction: ONE merged even/odd select matmul ----
    p1 = jnp.dot(sel1, m1.astype(bf16), preferred_element_type=f32)      # (256, 128)
    a1 = jnp.maximum(p1[:BT2, :], p1[BT2:, :])                  # (128, 128) f32

    # ---- conv2: ONE MXU matmul; kh folded into K by a lane-aligned concat of
    #      5 row-shifted copies (shifts never cross the 16-row-per-image blocks) ----
    a1p = jnp.concatenate([a1, jnp.zeros((K5 - 1, LP), f32)], axis=0)    # (132, 128)
    lhs2 = jnp.concatenate([a1p[kh:kh + BT2, :] for kh in range(K5)], axis=1)  # (128, 640)
    y2 = jnp.dot(lhs2.astype(bf16), band2, preferred_element_type=f32)   # (128, 256)
    m2 = jnp.maximum(jnp.maximum(y2[:, :LP], y2[:, LP:]) + bias2, 0.0)
    # ---- H-pool 2 + compaction + reorder to pooled-row-major (for fc1) ----
    p2 = jnp.dot(sel2, m2.astype(bf16), preferred_element_type=f32)      # (80, 128)
    a2 = jnp.maximum(p2[:PH2 * BT, :], p2[PH2 * BT:, :])                 # (40, 128)

    # ---- fc1 -> fc2 -> fc3 (flatten folded into wf1; 128-lane-dense output) ----
    lhs_fc = jnp.concatenate([a2[j * BT:(j + 1) * BT, :] for j in range(PH2)],
                             axis=1)                                     # (8, 640)
    h1 = jnp.dot(lhs_fc.astype(bf16), wf1, preferred_element_type=f32) + bf1
    h2 = jnp.dot(h1.astype(bf16), wf2, preferred_element_type=f32) + bf2
    out = jnp.dot(h2.astype(bf16), wf3, preferred_element_type=f32) + bf3
    o_ref[...] = out                                                     # (8, 128)


# --------------------------- one-time weight packing ------------------------ #

def _conv_band(w_oihw, in_w, parity):
    """band[kh, w*Cin+ci, p*Cout+co] = w[co, ci, kh, kw] with w = 2*p + parity + kw.
    One matmul over (w, ci) then implements the (kw, ci) contraction of a valid
    stride-1 conv restricted to even/odd output columns (kh handled by the caller)."""
    w_oihw = np.asarray(w_oihw, np.float32)
    Cout, Cin, KH, KW = w_oihw.shape
    OW = in_w - KW + 1
    OW2 = OW // 2
    P = np.zeros((KW, OW2, in_w), np.float32)
    for kw in range(KW):
        for p_ in range(OW2):
            P[kw, p_, 2 * p_ + parity + kw] = 1.0
    band = np.einsum("kpw,oihk->hwipo", P, w_oihw)
    return band.reshape(KH, in_w * Cin, OW2 * Cout)


def pack_params(p):
    """One-time repack of PyTorch-layout params into 3 VMEM slabs (2 bf16 + 1 f32)."""
    w1 = np.asarray(p["conv1_w"], np.float32)
    w2 = np.asarray(p["conv2_w"], np.float32)
    assert w1.shape == (C1, 1, K5, K5) and w2.shape == (C2, C1, K5, K5)
    assert p["fc1_w"].shape == (F1, C2 * PH2 * PH2)

    # conv1 bands: rows kh*32 + w, cols [even (84->128) | odd (84->128)]
    band1 = np.zeros((K5, IN_HW, 2 * LP), np.float32)
    band1[:, :, :PW1 * C1] = _conv_band(w1, IN_HW, 0)
    band1[:, :, LP:LP + PW1 * C1] = _conv_band(w1, IN_HW, 1)
    band1 = band1.reshape(K5 * IN_HW, 2 * LP)

    # conv2 bands: rows kh*128 + (w*6+ci), cols [even (80->128) | odd (80->128)]
    band2 = np.zeros((K5, LP, 2 * LP), np.float32)
    band2[:, :PW1 * C1, :PH2 * C2] = _conv_band(w2, PW1, 0)
    band2[:, :PW1 * C1, LP:LP + PH2 * C2] = _conv_band(w2, PW1, 1)
    band2 = band2.reshape(K5 * LP, 2 * LP)

    # merged even/odd H-pool-1 select: out row par*128 + b*16 + i picks src row
    # b*32 + 2i + par (i < 14); also discards the 4 garbage conv1 rows per image.
    sel1 = np.zeros((2 * BT * RPI2, BT * RPI1), np.float32)
    for par in (0, 1):
        for b in range(BT):
            for i in range(PW1):
                sel1[par * BT * RPI2 + b * RPI2 + i, b * RPI1 + 2 * i + par] = 1.0

    # merged even/odd H-pool-2 select, output reordered to pooled-row-major
    # (row j*BT + b) so the fc1 flatten becomes aligned 8-row slices.
    sel2 = np.zeros((2 * PH2 * BT, BT * RPI2), np.float32)
    for par in (0, 1):
        for j in range(PH2):
            for b in range(BT):
                sel2[par * PH2 * BT + j * BT + b, b * RPI2 + 2 * j + par] = 1.0

    # fc1: fold torch's C-major flatten (idx = c*25 + h*5 + w); activation lane
    # layout for pooled-row j is (w*16 + c).
    f1w = np.asarray(p["fc1_w"], np.float32)
    wf1_core = np.transpose(f1w.reshape(F1, C2, PH2, PH2), (2, 3, 1, 0))  # (h, w, c, n)
    wf1 = np.zeros((PH2, LP, LP), np.float32)
    wf1[:, :PH2 * C2, :F1] = wf1_core.reshape(PH2, PH2 * C2, F1)
    wf1 = wf1.reshape(PH2 * LP, LP)

    wf2 = np.zeros((LP, LP), np.float32)
    wf2[:F1, :F2] = np.asarray(p["fc2_w"], np.float32).T
    out_dim = p["fc3_w"].shape[0]
    assert out_dim <= LP
    wf3 = np.zeros((LP, LP), np.float32)
    wf3[:F2, :out_dim] = np.asarray(p["fc3_w"], np.float32).T

    slab_a = np.concatenate([band1, sel1, band2], axis=0)          # (1056, 256)
    slab_b = np.concatenate([sel2, wf1, wf2, wf3], axis=0)         # (976, 128)
    assert slab_a.shape == (A_END, 2 * LP) and slab_b.shape == (B_END, LP)

    biases = np.zeros((8, LP), np.float32)
    biases[0, :PW1 * C1] = np.tile(np.asarray(p["conv1_b"], np.float32), PW1)
    biases[1, :PH2 * C2] = np.tile(np.asarray(p["conv2_b"], np.float32), PH2)
    biases[2, :F1] = np.asarray(p["fc1_b"], np.float32)
    biases[3, :F2] = np.asarray(p["fc2_b"], np.float32)
    biases[4, :out_dim] = np.asarray(p["fc3_b"], np.float32)

    return (jnp.asarray(slab_a, jnp.bfloat16),
            jnp.asarray(slab_b, jnp.bfloat16),
            jnp.asarray(biases, jnp.float32))


# ------------------------------ forward wrapper ----------------------------- #

@partial(jax.jit, static_argnums=(4,))
def lenet_forward(x_nchw, wa, wb, biases, out_dim):
    B = x_nchw.shape[0]
    assert x_nchw.shape[1:] == (1, IN_HW, IN_HW), x_nchw.shape
    x = x_nchw.reshape(B, IN_HW, IN_HW).astype(jnp.float32)

    # Layout plumbing (not compute): im2row so conv1's kh loop lives in the K dim.
    # xr[b, oh, kh*32 + w] = x[b, oh+kh, w]; rows 28..31 zero-padded per image.
    xr = jnp.concatenate([x[:, kh:kh + OH1, :] for kh in range(K5)], axis=-1)
    Bp = ((B + BT - 1) // BT) * BT
    xr = jnp.pad(xr, ((0, Bp - B), (0, RPI1 - OH1), (0, 0)))       # (Bp, 32, 160)
    xr = xr.reshape(Bp * RPI1, K5 * IN_HW).astype(jnp.bfloat16)    # (Bp*32, 160)

    out = pl.pallas_call(
        _lenet_kernel,
        out_shape=jax.ShapeDtypeStruct((Bp, LP), jnp.float32),
        grid=(Bp // BT,),
        in_specs=[
            pl.BlockSpec((BT * RPI1, K5 * IN_HW), lambda i: (i, 0)),
            pl.BlockSpec(wa.shape, lambda i: (0, 0)),
            pl.BlockSpec(wb.shape, lambda i: (0, 0)),
            pl.BlockSpec(biases.shape, lambda i: (0, 0)),
        ],
        out_specs=pl.BlockSpec((BT, LP), lambda i: (i, 0)),
        compiler_params=pltpu.CompilerParams(dimension_semantics=("parallel",)),
    )(xr, wa, wb, biases)
    return out[:B, :out_dim]


# --------------------------- params & pure-JAX reference -------------------- #

def init_params(key, output_dim):
    ks = jax.random.split(key, 10)

    def n(k, shape, scale):
        return scale * jax.random.normal(k, shape, jnp.float32)

    # PyTorch conventions: conv (Cout, Cin, KH, KW), linear (out, in).
    return {
        "conv1_w": n(ks[0], (C1, 1, K5, K5), 0.2),
        "conv1_b": n(ks[1], (C1,), 0.1),
        "conv2_w": n(ks[2], (C2, C1, K5, K5), 0.1),
        "conv2_b": n(ks[3], (C2,), 0.1),
        "fc1_w": n(ks[4], (F1, C2 * PH2 * PH2), 0.05),
        "fc1_b": n(ks[5], (F1,), 0.05),
        "fc2_w": n(ks[6], (F2, F1), 0.05),
        "fc2_b": n(ks[7], (F2,), 0.05),
        "fc3_w": n(ks[8], (output_dim, F2), 0.05),
        "fc3_b": n(ks[9], (output_dim,), 0.05),
    }


def lenet_reference(x, p):
    """Pure-JAX mirror of the PyTorch forward pass (high precision, for checks)."""
    hi = jax.lax.Precision.HIGHEST
    dn = ("NCHW", "OIHW", "NCHW")
    y = jax.lax.conv_general_dilated(x, p["conv1_w"], (1, 1), "VALID",
                                     dimension_numbers=dn, precision=hi)
    y = y + p["conv1_b"][None, :, None, None]
    y = jax.lax.reduce_window(y, -jnp.inf, jax.lax.max,
                              (1, 1, 2, 2), (1, 1, 2, 2), "VALID")
    y = jnp.maximum(y, 0.0)
    y = jax.lax.conv_general_dilated(y, p["conv2_w"], (1, 1), "VALID",
                                     dimension_numbers=dn, precision=hi)
    y = y + p["conv2_b"][None, :, None, None]
    y = jax.lax.reduce_window(y, -jnp.inf, jax.lax.max,
                              (1, 1, 2, 2), (1, 1, 2, 2), "VALID")
    y = jnp.maximum(y, 0.0)
    y = y.reshape(y.shape[0], -1)
    y = jnp.dot(y, p["fc1_w"].T, precision=hi) + p["fc1_b"]
    y = jnp.dot(y, p["fc2_w"].T, precision=hi) + p["fc2_b"]
    y = jnp.dot(y, p["fc3_w"].T, precision=hi) + p["fc3_b"]
    return y


if __name__ == "__main__":
    key = jax.random.PRNGKey(0)
    kx, kp = jax.random.split(key)

    B, out_dim = 16, 10                      # B=16, BT=8 -> grid (2,): both v7x TCs busy
    x = jax.random.normal(kx, (B, 1, IN_HW, IN_HW), jnp.float32)
    params = init_params(kp, output_dim=out_dim)
    wa, wb, biases = pack_params(params)     # one-time repack (off the hot path)

    out = jax.block_until_ready(lenet_forward(x, wa, wb, biases, out_dim))
    ref = jax.block_until_ready(lenet_reference(x, params))

    assert out.shape == (B, out_dim), out.shape
    # bf16 matmul operands with f32 accumulation: small, expected rounding vs f32 ref.
    if not bool(jnp.allclose(out, ref, atol=2e-2, rtol=2e-2)):
        err = float(jnp.max(jnp.abs(out - ref)))
        raise AssertionError(f"Pallas LeNet output mismatch vs reference (max |err|={err})")
    print("KERNEL_OK")
</pallas_src>

<mosaic_0001>
module attributes {stable_mosaic.version = 11 : i64} {
  func.func @_lenet_kernel(%arg0: i32, %arg1: memref<256x160xbf16, #tpu.memory_space<vmem>>, %arg2: memref<1056x256xbf16, #tpu.memory_space<vmem>>, %arg3: memref<976x128xbf16, #tpu.memory_space<vmem>>, %arg4: memref<8x128xf32, #tpu.memory_space<vmem>>, %arg5: memref<8x128xf32, #tpu.memory_space<vmem>>) attributes {dimension_semantics = [#tpu.dimension_semantics<parallel>], iteration_bounds = array<i64: 2>, scalar_prefetch = 0 : i64, scratch_operands = 0 : i64, tpu.core_type = #tpu.core_type<tc>, window_params = [{transform_indices = @transform_0, window_bounds = array<i64: 256, 160>}, {pipeline_mode = #tpu.pipeline_mode<synchronous>, transform_indices = @transform_1, window_bounds = array<i64: 1056, 256>}, {pipeline_mode = #tpu.pipeline_mode<synchronous>, transform_indices = @transform_2, window_bounds = array<i64: 976, 128>}, {pipeline_mode = #tpu.pipeline_mode<synchronous>, transform_indices = @transform_3, window_bounds = array<i64: 8, 128>}, {transform_indices = @transform_4, window_bounds = array<i64: 8, 128>}]} {
    %c0 = arith.constant 0 : index
    %c0_0 = arith.constant 0 : index
    %0 = vector.load %arg2[%c0, %c0_0] : memref<1056x256xbf16, #tpu.memory_space<vmem>>, vector<160x256xbf16>
    %c160 = arith.constant 160 : index
    %c0_1 = arith.constant 0 : index
    %1 = vector.load %arg2[%c160, %c0_1] : memref<1056x256xbf16, #tpu.memory_space<vmem>>, vector<256x256xbf16>
    %c416 = arith.constant 416 : index
    %c0_2 = arith.constant 0 : index
    %2 = vector.load %arg2[%c416, %c0_2] : memref<1056x256xbf16, #tpu.memory_space<vmem>>, vector<640x256xbf16>
    %c0_3 = arith.constant 0 : index
    %c0_4 = arith.constant 0 : index
    %3 = vector.load %arg3[%c0_3, %c0_4] : memref<976x128xbf16, #tpu.memory_space<vmem>>, vector<80x128xbf16>
    %c80 = arith.constant 80 : index
    %c0_5 = arith.constant 0 : index
    %4 = vector.load %arg3[%c80, %c0_5] : memref<976x128xbf16, #tpu.memory_space<vmem>>, vector<640x128xbf16>
    %c720 = arith.constant 720 : index
    %c0_6 = arith.constant 0 : index
    %5 = vector.load %arg3[%c720, %c0_6] : memref<976x128xbf16, #tpu.memory_space<vmem>>, vector<128x128xbf16>
    %c848 = arith.constant 848 : index
    %c0_7 = arith.constant 0 : index
    %6 = vector.load %arg3[%c848, %c0_7] : memref<976x128xbf16, #tpu.memory_space<vmem>>, vector<128x128xbf16>
    %c0_8 = arith.constant 0 : index
    %c0_9 = arith.constant 0 : index
    %7 = vector.load %arg4[%c0_8, %c0_9] : memref<8x128xf32, #tpu.memory_space<vmem>>, vector<1x128xf32>
    %c1 = arith.constant 1 : index
    %c0_10 = arith.constant 0 : index
    %8 = vector.load %arg4[%c1, %c0_10] : memref<8x128xf32, #tpu.memory_space<vmem>>, vector<1x128xf32>
    %c2 = arith.constant 2 : index
    %c0_11 = arith.constant 0 : index
    %9 = vector.load %arg4[%c2, %c0_11] : memref<8x128xf32, #tpu.memory_space<vmem>>, vector<1x128xf32>
    %c3 = arith.constant 3 : index
    %c0_12 = arith.constant 0 : index
    %10 = vector.load %arg4[%c3, %c0_12] : memref<8x128xf32, #tpu.memory_space<vmem>>, vector<1x128xf32>
    %c4 = arith.constant 4 : index
    %c0_13 = arith.constant 0 : index
    %11 = vector.load %arg4[%c4, %c0_13] : memref<8x128xf32, #tpu.memory_space<vmem>>, vector<1x128xf32>
    %c0_14 = arith.constant 0 : index
    %c0_15 = arith.constant 0 : index
    %12 = vector.load %arg1[%c0_14, %c0_15] : memref<256x160xbf16, #tpu.memory_space<vmem>>, vector<256x160xbf16>
    %cst = arith.constant dense<0.000000e+00> : vector<256x256xf32>
    %13 = tpu.matmul %12, %0, %cst {dimension_numbers = #tpu.dot_dimension_numbers<[1], [0], [0], [1], [0, 0, 1, 1], [], []>} : vector<256x160xbf16>, vector<160x256xbf16>, vector<256x256xf32> -> vector<256x256xf32>
    %14 = vector.extract_strided_slice %13 {offsets = [0, 0], sizes = [256, 128], strides = [1, 1]} : vector<256x256xf32> to vector<256x128xf32>
    %15 = vector.extract_strided_slice %13 {offsets = [0, 128], sizes = [256, 128], strides = [1, 1]} : vector<256x256xf32> to vector<256x128xf32>
    %16 = arith.maximumf %14, %15 : vector<256x128xf32>
    %17 = vector.broadcast %7 : vector<1x128xf32> to vector<256x128xf32>
    %18 = arith.addf %16, %17 : vector<256x128xf32>
    %cst_16 = arith.constant 0.000000e+00 : f32
    %19 = vector.broadcast %cst_16 : f32 to vector<256x128xf32>
    %20 = arith.maximumf %18, %19 : vector<256x128xf32>
    %21 = arith.truncf %20 : vector<256x128xf32> to vector<256x128xbf16>
    %cst_17 = arith.constant dense<0.000000e+00> : vector<256x128xf32>
    %22 = tpu.matmul %1, %21, %cst_17 {dimension_numbers = #tpu.dot_dimension_numbers<[1], [0], [0], [1], [0, 0, 1, 1], [], []>} : vector<256x256xbf16>, vector<256x128xbf16>, vector<256x128xf32> -> vector<256x128xf32>
    %23 = vector.extract_strided_slice %22 {offsets = [0, 0], sizes = [128, 128], strides = [1, 1]} : vector<256x128xf32> to vector<128x128xf32>
    %24 = vector.extract_strided_slice %22 {offsets = [128, 0], sizes = [128, 128], strides = [1, 1]} : vector<256x128xf32> to vector<128x128xf32>
    %25 = arith.maximumf %23, %24 : vector<128x128xf32>
    %cst_18 = arith.constant 0.000000e+00 : f32
    %26 = vector.broadcast %cst_18 : f32 to vector<4x128xf32>
    %27 = tpu.concatenate %25, %26 in 0 : vector<128x128xf32>, vector<4x128xf32> -> vector<132x128xf32>
    %28 = vector.extract_strided_slice %27 {offsets = [0, 0], sizes = [128, 128], strides = [1, 1]} : vector<132x128xf32> to vector<128x128xf32>
    %29 = vector.extract_strided_slice %27 {offsets = [1, 0], sizes = [128, 128], strides = [1, 1]} : vector<132x128xf32> to vector<128x128xf32>
    %30 = vector.extract_strided_slice %27 {offsets = [2, 0], sizes = [128, 128], strides = [1, 1]} : vector<132x128xf32> to vector<128x128xf32>
    %31 = vector.extract_strided_slice %27 {offsets = [3, 0], sizes = [128, 128], strides = [1, 1]} : vector<132x128xf32> to vector<128x128xf32>
    %32 = vector.extract_strided_slice %27 {offsets = [4, 0], sizes = [128, 128], strides = [1, 1]} : vector<132x128xf32> to vector<128x128xf32>
    %33 = tpu.concatenate %28, %29, %30, %31, %32 in 1 : vector<128x128xf32>, vector<128x128xf32>, vector<128x128xf32>, vector<128x128xf32>, vector<128x128xf32> -> vector<128x640xf32>
    %34 = arith.truncf %33 : vector<128x640xf32> to vector<128x640xbf16>
    %cst_19 = arith.constant dense<0.000000e+00> : vector<128x256xf32>
    %35 = tpu.matmul %34, %2, %cst_19 {dimension_numbers = #tpu.dot_dimension_numbers<[1], [0], [0], [1], [0, 0, 1, 1], [], []>} : vector<128x640xbf16>, vector<640x256xbf16>, vector<128x256xf32> -> vector<128x256xf32>
    %36 = vector.extract_strided_slice %35 {offsets = [0, 0], sizes = [128, 128], strides = [1, 1]} : vector<128x256xf32> to vector<128x128xf32>
    %37 = vector.extract_strided_slice %35 {offsets = [0, 128], sizes = [128, 128], strides = [1, 1]} : vector<128x256xf32> to vector<128x128xf32>
    %38 = arith.maximumf %36, %37 : vector<128x128xf32>
    %39 = vector.broadcast %8 : vector<1x128xf32> to vector<128x128xf32>
    %40 = arith.addf %38, %39 : vector<128x128xf32>
    %cst_20 = arith.constant 0.000000e+00 : f32
    %41 = vector.broadcast %cst_20 : f32 to vector<128x128xf32>
    %42 = arith.maximumf %40, %41 : vector<128x128xf32>
    %43 = arith.truncf %42 : vector<128x128xf32> to vector<128x128xbf16>
    %cst_21 = arith.constant dense<0.000000e+00> : vector<80x128xf32>
    %44 = tpu.matmul %3, %43, %cst_21 {dimension_numbers = #tpu.dot_dimension_numbers<[1], [0], [0], [1], [0, 0, 1, 1], [], []>} : vector<80x128xbf16>, vector<128x128xbf16>, vector<80x128xf32> -> vector<80x128xf32>
    %45 = vector.extract_strided_slice %44 {offsets = [0, 0], sizes = [40, 128], strides = [1, 1]} : vector<80x128xf32> to vector<40x128xf32>
    %46 = vector.extract_strided_slice %44 {offsets = [40, 0], sizes = [40, 128], strides = [1, 1]} : vector<80x128xf32> to vector<40x128xf32>
    %47 = arith.maximumf %45, %46 : vector<40x128xf32>
    %48 = vector.extract_strided_slice %47 {offsets = [0, 0], sizes = [8, 128], strides = [1, 1]} : vector<40x128xf32> to vector<8x128xf32>
    %49 = vector.extract_strided_slice %47 {offsets = [8, 0], sizes = [8, 128], strides = [1, 1]} : vector<40x128xf32> to vector<8x128xf32>
    %50 = vector.extract_strided_slice %47 {offsets = [16, 0], sizes = [8, 128], strides = [1, 1]} : vector<40x128xf32> to vector<8x128xf32>
    %51 = vector.extract_strided_slice %47 {offsets = [24, 0], sizes = [8, 128], strides = [1, 1]} : vector<40x128xf32> to vector<8x128xf32>
    %52 = vector.extract_strided_slice %47 {offsets = [32, 0], sizes = [8, 128], strides = [1, 1]} : vector<40x128xf32> to vector<8x128xf32>
    %53 = tpu.concatenate %48, %49, %50, %51, %52 in 1 : vector<8x128xf32>, vector<8x128xf32>, vector<8x128xf32>, vector<8x128xf32>, vector<8x128xf32> -> vector<8x640xf32>
    %54 = arith.truncf %53 : vector<8x640xf32> to vector<8x640xbf16>
    %cst_22 = arith.constant dense<0.000000e+00> : vector<8x128xf32>
    %55 = tpu.matmul %54, %4, %cst_22 {dimension_numbers = #tpu.dot_dimension_numbers<[1], [0], [0], [1], [0, 0, 1, 1], [], []>} : vector<8x640xbf16>, vector<640x128xbf16>, vector<8x128xf32> -> vector<8x128xf32>
    %56 = vector.broadcast %9 : vector<1x128xf32> to vector<8x128xf32>
    %57 = arith.addf %55, %56 : vector<8x128xf32>
    %58 = arith.truncf %57 : vector<8x128xf32> to vector<8x128xbf16>
    %cst_23 = arith.constant dense<0.000000e+00> : vector<8x128xf32>
    %59 = tpu.matmul %58, %5, %cst_23 {dimension_numbers = #tpu.dot_dimension_numbers<[1], [0], [0], [1], [0, 0, 1, 1], [], []>} : vector<8x128xbf16>, vector<128x128xbf16>, vector<8x128xf32> -> vector<8x128xf32>
    %60 = vector.broadcast %10 : vector<1x128xf32> to vector<8x128xf32>
    %61 = arith.addf %59, %60 : vector<8x128xf32>
    %62 = arith.truncf %61 : vector<8x128xf32> to vector<8x128xbf16>
    %cst_24 = arith.constant dense<0.000000e+00> : vector<8x128xf32>
    %63 = tpu.matmul %62, %6, %cst_24 {dimension_numbers = #tpu.dot_dimension_numbers<[1], [0], [0], [1], [0, 0, 1, 1], [], []>} : vector<8x128xbf16>, vector<128x128xbf16>, vector<8x128xf32> -> vector<8x128xf32>
    %64 = vector.broadcast %11 : vector<1x128xf32> to vector<8x128xf32>
    %65 = arith.addf %63, %64 : vector<8x128xf32>
    %c0_25 = arith.constant 0 : index
    %c0_26 = arith.constant 0 : index
    %66 = vector.load %arg5[%c0_25, %c0_26] : memref<8x128xf32, #tpu.memory_space<vmem>>, vector<8x128xf32>
    tpu.vector_store %arg5[%c0_25, %c0_26], %65 {strides = array<i32>} : memref<8x128xf32, #tpu.memory_space<vmem>>, vector<8x128xf32>,
    return
  }
  func.func @transform_0(%arg0: i32) -> (i32, i32) {
    %c0_i32 = arith.constant 0 : i32
    %c0_i32_0 = arith.constant 0 : i32
    return %arg0, %c0_i32 : i32, i32
  }
  func.func @transform_1(%arg0: i32) -> (i32, i32) {
    %c0_i32 = arith.constant 0 : i32
    %c0_i32_0 = arith.constant 0 : i32
    %c0_i32_1 = arith.constant 0 : i32
    return %c0_i32, %c0_i32_0 : i32, i32
  }
  func.func @transform_2(%arg0: i32) -> (i32, i32) {
    %c0_i32 = arith.constant 0 : i32
    %c0_i32_0 = arith.constant 0 : i32
    %c0_i32_1 = arith.constant 0 : i32
    return %c0_i32, %c0_i32_0 : i32, i32
  }
  func.func @transform_3(%arg0: i32) -> (i32, i32) {
    %c0_i32 = arith.constant 0 : i32
    %c0_i32_0 = arith.constant 0 : i32
    %c0_i32_1 = arith.constant 0 : i32
    return %c0_i32, %c0_i32_0 : i32, i32
  }
  func.func @transform_4(%arg0: i32) -> (i32, i32) {
    %c0_i32 = arith.constant 0 : i32
    %c0_i32_0 = arith.constant 0 : i32
    return %arg0, %c0_i32 : i32, i32
  }
}

</mosaic_0001>

<llo_original>
// kernel: lenet_forward.1
$region0: #{lenet_forward.1}
  #allocation0 [shape = 'u32[]', space=smem, size = 0x4, offset = 0x4, fixed_abs, tag = 'smem constant byte address 0x4 - core index']
  #allocation1 [shape = 'u32[72,128]{1,0:T(1,128)}', space=vmem, size = 0x9000, scoped, tag = 'internal scratch']
  %s0 = inlined_call_operand.vmem [shape: bf16[512,160], index: 0, kind: input, shape index: {}]
  %s1 = inlined_call_operand.vmem [shape: bf16[1056,256], index: 1, kind: input, shape index: {}]
  %s2 = inlined_call_operand.vmem [shape: bf16[976,128], index: 2, kind: input, shape index: {}]
  %s3 = inlined_call_operand.vmem [shape: f32[8,128], index: 3, kind: input, shape index: {}]
  %s4 = inlined_call_operand.hbm [shape: f32[16,128], index: 4, kind: output, shape index: {}]
  %s5 = sld [smem:[#allocation0]]
  $region49: #{lenet_forward.1} parent=0
    _
  %s7 = ssub.s32 1, %s5
  %s8 = scalar_select 0, %s7, %s5
  $region1: #{lenet_forward.1} parent=0
    #allocation2 [shape = 'u8[8192]{0}', space=vmem, size = 0x2000, scoped, tag = 'output window, operand 0']
    #allocation3 [shape = 's32[2]{0}', space=sflag, size = 0x8, scoped, tag = 'scoped memory for lenet_forward.1']
    %9 = vsyncpa [#allocation3], 0
    %s10 = scalar_lea.sflag [#allocation3], 1
    %11 = vsyncpa %s10, 0
    loop: start=0, step=1, limit=4
    $region2: #{lenet_forward.1} parent=1 // loop_pre_header
      _
    $region3: #{lenet_forward.1} parent=1 // loop_header
      %s13 = sphi 0, %s17
      %p14 = scmp.ge.s32.totalorder %s13, 4
      %s23 = sphi 0, %s25
      %s26 = sphi 0, %s23
      %s27 = sphi 0, %s26
      %s43 = sphi 0, %s27
      %s47 = sphi 0, %s47
      %s49 = sphi 0, %s47
      %s50 = sphi 0, %s49
      %s64 = sphi 0, %s50
      %s68 = sphi 0, %s68
      %s70 = sphi 0, %s68
      %s71 = sphi 0, %s70
      %s85 = sphi 0, %s71
      %s89 = sphi 0, %s89
      %s91 = sphi 0, %s89
      %s92 = sphi 0, %s91
      %s106 = sphi 0, %s92
      %s112 = sphi 0, %s114
      %s115 = sphi 0, %s112
      %s116 = sphi 0, %s115
      %s132 = sphi 0, %s116
    $region4: #{lenet_forward.1} parent=1 // loop_header_branch
      %16 = sbr.rel (%p14) target = $region8
    $region5: #{lenet_forward.1} parent=1 // loop_body
      %s18 = ssub.s32 %s13, 1
      %s19 = ssub.s32 %s13, 2
      %s20 = sadd.s32 %s13, 1
      %s21 = ssub.s32 %s13, %s20
      %p22 = scmp.eq.s32.totalorder %s21, 0
      %s24 = sadd.s32 %s23, 1
      %s25 = scalar_select %p22, %s23, %s24
      %p28 = pneg %p22
      %p29 = scmp.eq.s32.totalorder %s13, 1
      %p30 = por %p28, %p29
      %p31 = scmp.ne.s32.totalorder %s23, %s26
      %p32 = scmp.eq.s32.totalorder %s13, 0
      %p33 = por %p31, %p32
      %p34 = scmp.ne.s32.totalorder %s23, %s26
      %p35 = scmp.eq.s32.totalorder %s18, 1
      %p36 = por %p34, %p35
      %p37 = scmp.ne.s32.totalorder %s26, %s27
      %p38 = scmp.eq.s32.totalorder %s18, 0
      %p39 = por %p37, %p38
      %p40 = scmp.ne.s32.totalorder %s26, %s27
      %p41 = scmp.eq.s32.totalorder %s19, 1
      %p42 = por %p40, %p41
      %p44 = scmp.ne.s32.totalorder %s27, %s43
      %p45 = scmp.eq.s32.totalorder %s19, 0
      %p46 = por %p44, %p45
      %s48 = sadd.s32 %s47, 1
      %p51 = scmp.eq.s32.totalorder %s13, 1
      %p52 = scmp.ne.s32.totalorder %s47, %s49
      %p53 = scmp.eq.s32.totalorder %s13, 0
      %p54 = por %p52, %p53
      %p55 = scmp.ne.s32.totalorder %s47, %s49
      %p56 = scmp.eq.s32.totalorder %s18, 1
      %p57 = por %p55, %p56
      %p58 = scmp.ne.s32.totalorder %s49, %s50
      %p59 = scmp.eq.s32.totalorder %s18, 0
      %p60 = por %p58, %p59
      %p61 = scmp.ne.s32.totalorder %s49, %s50
      %p62 = scmp.eq.s32.totalorder %s19, 1
      %p63 = por %p61, %p62
      %p65 = scmp.ne.s32.totalorder %s50, %s64
      %p66 = scmp.eq.s32.totalorder %s19, 0
      %p67 = por %p65, %p66
      %s69 = sadd.s32 %s68, 1
      %p72 = scmp.eq.s32.totalorder %s13, 1
      %p73 = scmp.ne.s32.totalorder %s68, %s70
      %p74 = scmp.eq.s32.totalorder %s13, 0
      %p75 = por %p73, %p74
      %p76 = scmp.ne.s32.totalorder %s68, %s70
      %p77 = scmp.eq.s32.totalorder %s18, 1
      %p78 = por %p76, %p77
      %p79 = scmp.ne.s32.totalorder %s70, %s71
      %p80 = scmp.eq.s32.totalorder %s18, 0
      %p81 = por %p79, %p80
      %p82 = scmp.ne.s32.totalorder %s70, %s71
      %p83 = scmp.eq.s32.totalorder %s19, 1
      %p84 = por %p82, %p83
      %p86 = scmp.ne.s32.totalorder %s71, %s85
      %p87 = scmp.eq.s32.totalorder %s19, 0
      %p88 = por %p86, %p87
      %s90 = sadd.s32 %s89, 1
      %p93 = scmp.eq.s32.totalorder %s13, 1
      %p94 = scmp.ne.s32.totalorder %s89, %s91
      %p95 = scmp.eq.s32.totalorder %s13, 0
      %p96 = por %p94, %p95
      %p97 = scmp.ne.s32.totalorder %s89, %s91
      %p98 = scmp.eq.s32.totalorder %s18, 1
      %p99 = por %p97, %p98
      %p100 = scmp.ne.s32.totalorder %s91, %s92
      %p101 = scmp.eq.s32.totalorder %s18, 0
      %p102 = por %p100, %p101
      %p103 = scmp.ne.s32.totalorder %s91, %s92
      %p104 = scmp.eq.s32.totalorder %s19, 1
      %p105 = por %p103, %p104
      %p107 = scmp.ne.s32.totalorder %s92, %s106
      %p108 = scmp.eq.s32.totalorder %s19, 0
      %p109 = por %p107, %p108
      %s110 = ssub.s32 %s13, %s20
      %p111 = scmp.eq.s32.totalorder %s110, 0
      %s113 = sadd.s32 %s112, 1
      %s114 = scalar_select %p111, %s112, %s113
      %p117 = pneg %p111
      %p118 = scmp.eq.s32.totalorder %s13, 1
      %p119 = por %p117, %p118
      %p120 = scmp.ne.s32.totalorder %s112, %s115
      %p121 = scmp.eq.s32.totalorder %s13, 0
      %p122 = por %p120, %p121
      %p123 = scmp.ne.s32.totalorder %s112, %s115
      %p124 = scmp.eq.s32.totalorder %s18, 1
      %p125 = por %p123, %p124
      %p126 = scmp.ne.s32.totalorder %s115, %s116
      %p127 = scmp.eq.s32.totalorder %s18, 0
      %p128 = por %p126, %p127
      %p129 = scmp.ne.s32.totalorder %s115, %s116
      %p130 = scmp.eq.s32.totalorder %s19, 1
      %p131 = por %p129, %p130
      %p133 = scmp.ne.s32.totalorder %s116, %s132
      %p134 = scmp.eq.s32.totalorder %s19, 0
      %p135 = por %p133, %p134
      %p136 = scmp.le.s32.totalorder 1, %s13
      %p137 = scmp.lt.s32.totalorder %s13, 3
      %p138 = pnand %p136, %p137
      %p139 = pneg %p138
      // Predicated region
      $region9: #{lenet_forward.1} parent=5 // pred_check
        _
      $region10: #{lenet_forward.1} parent=5 // pred_check_branch
        %141 = sbr.rel (%p138) target = $region12
      $region11: #{lenet_forward.1} parent=5 // pred_region
        %s142 = ssub.s32 %s13, 1
        // Predicated region
        $region13: #{lenet_forward.1} parent=11 // pred_check
          %p143 = pneg %p60
        $region14: #{lenet_forward.1} parent=11 // pred_check_branch
          %145 = sbr.rel (%p143) target = $region16
        $region15: #{lenet_forward.1} parent=11 // pred_region
          _
        $region16: #{lenet_forward.1} parent=11 // pred_fallthru
          _
        // Predicated region
        $region17: #{lenet_forward.1} parent=11 // pred_check
          %p146 = pneg %p81
        $region18: #{lenet_forward.1} parent=11 // pred_check_branch
          %148 = sbr.rel (%p146) target = $region20
        $region19: #{lenet_forward.1} parent=11 // pred_region
          _
        $region20: #{lenet_forward.1} parent=11 // pred_fallthru
          _
        // Predicated region
        $region21: #{lenet_forward.1} parent=11 // pred_check
          %p149 = pneg %p102
        $region22: #{lenet_forward.1} parent=11 // pred_check_branch
          %151 = sbr.rel (%p149) target = $region24
        $region23: #{lenet_forward.1} parent=11 // pred_region
          _
        $region24: #{lenet_forward.1} parent=11 // pred_fallthru
          _
      $region12: #{lenet_forward.1} parent=5 // pred_fallthru
        _
      %p152 = scmp.lt.s32.totalorder %s13, 2
      // Predicated region
      $region25: #{lenet_forward.1} parent=5 // pred_check
        %p153 = pneg %p152
      $region26: #{lenet_forward.1} parent=5 // pred_check_branch
        %155 = sbr.rel (%p153) target = $region28
      $region27: #{lenet_forward.1} parent=5 // pred_region
        // Predicated region
        $region29: #{lenet_forward.1} parent=27 // pred_check
          %p156 = pneg %p33
        $region30: #{lenet_forward.1} parent=27 // pred_check_branch
          %158 = sbr.rel (%p156) target = $region32
        $region31: #{lenet_forward.1} parent=27 // pred_region
          %s159 = smul.u32 32, %s13
          %p160 = scmp.lt.s32.totalorder %s159, 63
          %s161 = scalar_select %p160, %s159, 63
          %s162 = smul.addr %s161, 2
          %s163 = smul.addr %s162, 4
          %s164 = scalar_lea.vmem %s0, %s163
          %s165 = smul.u32 32, %s13
        $region32: #{lenet_forward.1} parent=27 // pred_fallthru
          _
      $region28: #{lenet_forward.1} parent=5 // pred_fallthru
        _
      %p166 = scmp.le.s32.totalorder 1, %s13
      %p167 = scmp.lt.s32.totalorder %s13, 3
      %p168 = pnand %p166, %p167
      %p169 = pneg %p168
      // Predicated region
      $region33: #{lenet_forward.1} parent=5 // pred_check
        _
      $region34: #{lenet_forward.1} parent=5 // pred_check_branch
        %171 = sbr.rel (%p168) target = $region36
      $region35: #{lenet_forward.1} parent=5 // pred_region
        %s172 = ssub.s32 %s13, 1
        %s173 = smul.u32 32, %s18
        %p174 = scmp.lt.s32.totalorder %s173, 63
        %s175 = scalar_select %p174, %s173, 63
        %s176 = smul.addr %s175, 2
        %s177 = smul.addr %s176, 4
        %s178 = scalar_lea.vmem %s0, %s177
        %p179 = pneg %p39
        %p180 = pneg %p36
        %p181 = pneg %p60
        %p182 = pneg %p57
        %p183 = pneg %p81
        %p184 = pneg %p78
        %p185 = pneg %p102
        %p186 = pneg %p99
        %p187 = pneg %p128
        %p188 = pneg %p125
        %s189 = sand.u32 %s115, 1
        %s190 = scalar_lea.sflag [#allocation3], %s189
        %s191 = sand.u32 %s115, 1
        %s192 = smul.addr %s191, 8
        %s193 = scalar_lea.vmem [#allocation2], %s192
        %s194 = smul.u32 32, %s18
        %p195 = scmp.lt.s32.totalorder %s194, 63
        %s196 = scalar_select %p195, %s194, 63
        %s197 = smul.addr %s196, 2
        %s198 = smul.addr %s197, 4
        %s199 = scalar_lea.vmem %s0, %s198
        %s200 = smul.u32 32, %s18
        %v202 = vld [vmem:[%s1] sm:$0xff]
        %v203 = vld [vmem:[%s1 + $0x8] sm:$0xff]
        %v204 = vld [vmem:[%s1 + $0x10] sm:$0xff]
        %v205 = vld [vmem:[%s1 + $0x18] sm:$0xff]
        %v206 = vld [vmem:[%s1 + $0x20] sm:$0xff]
        %v207 = vld [vmem:[%s1 + $0x28] sm:$0xff]
        %v208 = vld [vmem:[%s1 + $0x30] sm:$0xff]
        %v209 = vld [vmem:[%s1 + $0x38] sm:$0xff]
        %v210 = vld [vmem:[%s1 + $0x40] sm:$0xff]
        %v211 = vld [vmem:[%s1 + $0x48] sm:$0xff]
        %v212 = vld [vmem:[%s1 + $0x50] sm:$0xff]
        %v213 = vld [vmem:[%s1 + $0x58] sm:$0xff]
        %v214 = vld [vmem:[%s1 + $0x60] sm:$0xff]
        %v215 = vld [vmem:[%s1 + $0x68] sm:$0xff]
        %v216 = vld [vmem:[%s1 + $0x70] sm:$0xff]
        %v217 = vld [vmem:[%s1 + $0x78] sm:$0xff]
        %v218 = vld [vmem:[%s1 + $0x80] sm:$0xff]
        %v219 = vld [vmem:[%s1 + $0x88] sm:$0xff]
        %v220 = vld [vmem:[%s1 + $0x90] sm:$0xff]
        %v221 = vld [vmem:[%s1 + $0x98] sm:$0xff]
        %v222 = vld [vmem:[%s1 + $0xa0] sm:$0xff]
        %v223 = vld [vmem:[%s1 + $0xa8] sm:$0xff]
        %v224 = vld [vmem:[%s1 + $0xb0] sm:$0xff]
        %v225 = vld [vmem:[%s1 + $0xb8] sm:$0xff]
        %v226 = vld [vmem:[%s1 + $0xc0] sm:$0xff]
        %v227 = vld [vmem:[%s1 + $0xc8] sm:$0xff]
        %v228 = vld [vmem:[%s1 + $0xd0] sm:$0xff]
        %v229 = vld [vmem:[%s1 + $0xd8] sm:$0xff]
        %v230 = vld [vmem:[%s1 + $0xe0] sm:$0xff]
        %v231 = vld [vmem:[%s1 + $0xe8] sm:$0xff]
        %v232 = vld [vmem:[%s1 + $0xf0] sm:$0xff]
        %v233 = vld [vmem:[%s1 + $0xf8] sm:$0xff]
        %v234 = vld [vmem:[%s1 + $0x100] sm:$0xff]
        %v235 = vld [vmem:[%s1 + $0x108] sm:$0xff]
        %v236 = vld [vmem:[%s1 + $0x110] sm:$0xff]
        %v237 = vld [vmem:[%s1 + $0x118] sm:$0xff]
        %v238 = vld [vmem:[%s1 + $0x120] sm:$0xff]
        %v239 = vld [vmem:[%s1 + $0x128] sm:$0xff]
        %v240 = vld [vmem:[%s1 + $0x130] sm:$0xff]
        %v241 = vld [vmem:[%s1 + $0x138] sm:$0xff]
        %v242 = vld [vmem:[%s1 + $0x140] sm:$0xff]
        %v243 = vld [vmem:[%s1 + $0x148] sm:$0xff]
        %v244 = vld [vmem:[%s1 + $0x150] sm:$0xff]
        %v245 = vld [vmem:[%s1 + $0x158] sm:$0xff]
        %v246 = vld [vmem:[%s1 + $0x160] sm:$0xff]
        %v247 = vld [vmem:[%s1 + $0x168] sm:$0xff]
        %v248 = vld [vmem:[%s1 + $0x170] sm:$0xff]
        %v249 = vld [vmem:[%s1 + $0x178] sm:$0xff]
        %v250 = vld [vmem:[%s1 + $0x180] sm:$0xff]
        %v251 = vld [vmem:[%s1 + $0x188] sm:$0xff]
        %v252 = vld [vmem:[%s1 + $0x190] sm:$0xff]
        %v253 = vld [vmem:[%s1 + $0x198] sm:$0xff]
        %v254 = vld [vmem:[%s1 + $0x1a0] sm:$0xff]
        %v255 = vld [vmem:[%s1 + $0x1a8] sm:$0xff]
        %v256 = vld [vmem:[%s1 + $0x1b0] sm:$0xff]
        %v257 = vld [vmem:[%s1 + $0x1b8] sm:$0xff]
        %v258 = vld [vmem:[%s1 + $0x1c0] sm:$0xff]
        %v259 = vld [vmem:[%s1 + $0x1c8] sm:$0xff]
        %v260 = vld [vmem:[%s1 + $0x1d0] sm:$0xff]
        %v261 = vld [vmem:[%s1 + $0x1d8] sm:$0xff]
        %v262 = vld [vmem:[%s1 + $0x1e0] sm:$0xff]
        %v263 = vld [vmem:[%s1 + $0x1e8] sm:$0xff]
        %v264 = vld [vmem:[%s1 + $0x1f0] sm:$0xff]
        %v265 = vld [vmem:[%s1 + $0x1f8] sm:$0xff]
        %v266 = vld [vmem:[%s1 + $0x200] sm:$0xff]
        %v267 = vld [vmem:[%s1 + $0x208] sm:$0xff]
        %v268 = vld [vmem:[%s1 + $0x210] sm:$0xff]
        %v269 = vld [vmem:[%s1 + $0x218] sm:$0xff]
        %v270 = vld [vmem:[%s1 + $0x220] sm:$0xff]
        %v271 = vld [vmem:[%s1 + $0x228] sm:$0xff]
        %v272 = vld [vmem:[%s1 + $0x230] sm:$0xff]
        %v273 = vld [vmem:[%s1 + $0x238] sm:$0xff]
        %v274 = vld [vmem:[%s1 + $0x240] sm:$0xff]
        %v275 = vld [vmem:[%s1 + $0x248] sm:$0xff]
        %v276 = vld [vmem:[%s1 + $0x250] sm:$0xff]
        %v277 = vld [vmem:[%s1 + $0x258] sm:$0xff]
        %v278 = vld [vmem:[%s1 + $0x260] sm:$0xff]
        %v279 = vld [vmem:[%s1 + $0x268] sm:$0xff]
        %v280 = vld [vmem:[%s1 + $0x270] sm:$0xff]
        %v281 = vld [vmem:[%s1 + $0x278] sm:$0xff]
        %v282 = vld [vmem:[%s1 + $0x280] sm:$0xff]
        %v283 = vld [vmem:[%s1 + $0x288] sm:$0xff]
        %v284 = vld [vmem:[%s1 + $0x290] sm:$0xff]
        %v285 = vld [vmem:[%s1 + $0x298] sm:$0xff]
        %v286 = vld [vmem:[%s1 + $0x2a0] sm:$0xff]
        %v287 = vld [vmem:[%s1 + $0x2a8] sm:$0xff]
        %v288 = vld [vmem:[%s1 + $0x2b0] sm:$0xff]
        %v289 = vld [vmem:[%s1 + $0x2b8] sm:$0xff]
        %v290 = vld [vmem:[%s1 + $0x2c0] sm:$0xff]
        %v291 = vld [vmem:[%s1 + $0x2c8] sm:$0xff]
        %v292 = vld [vmem:[%s1 + $0x2d0] sm:$0xff]
        %v293 = vld [vmem:[%s1 + $0x2d8] sm:$0xff]
        %v294 = vld [vmem:[%s1 + $0x2e0] sm:$0xff]
        %v295 = vld [vmem:[%s1 + $0x2e8] sm:$0xff]
        %v296 = vld [vmem:[%s1 + $0x2f0] sm:$0xff]
        %v297 = vld [vmem:[%s1 + $0x2f8] sm:$0xff]
        %v298 = vld [vmem:[%s1 + $0x300] sm:$0xff]
        %v299 = vld [vmem:[%s1 + $0x308] sm:$0xff]
        %v300 = vld [vmem:[%s1 + $0x310] sm:$0xff]
        %v301 = vld [vmem:[%s1 + $0x318] sm:$0xff]
        %v302 = vld [vmem:[%s1 + $0x320] sm:$0xff]
        %v303 = vld [vmem:[%s1 + $0x328] sm:$0xff]
        %v304 = vld [vmem:[%s1 + $0x330] sm:$0xff]
        %v305 = vld [vmem:[%s1 + $0x338] sm:$0xff]
        %v306 = vld [vmem:[%s1 + $0x340] sm:$0xff]
        %v307 = vld [vmem:[%s1 + $0x348] sm:$0xff]
        %v308 = vld [vmem:[%s1 + $0x350] sm:$0xff]
        %v309 = vld [vmem:[%s1 + $0x358] sm:$0xff]
        %v310 = vld [vmem:[%s1 + $0x360] sm:$0xff]
        %v311 = vld [vmem:[%s1 + $0x368] sm:$0xff]
        %v312 = vld [vmem:[%s1 + $0x370] sm:$0xff]
        %v313 = vld [vmem:[%s1 + $0x378] sm:$0xff]
        %v314 = vld [vmem:[%s1 + $0x380] sm:$0xff]
        %v315 = vld [vmem:[%s1 + $0x388] sm:$0xff]
        %v316 = vld [vmem:[%s1 + $0x390] sm:$0xff]
        %v317 = vld [vmem:[%s1 + $0x398] sm:$0xff]
        %v318 = vld [vmem:[%s1 + $0x3a0] sm:$0xff]
        %v319 = vld [vmem:[%s1 + $0x3a8] sm:$0xff]
        %v320 = vld [vmem:[%s1 + $0x3b0] sm:$0xff]
        %v321 = vld [vmem:[%s1 + $0x3b8] sm:$0xff]
        %v322 = vld [vmem:[%s1 + $0x3c0] sm:$0xff]
        %v323 = vld [vmem:[%s1 + $0x3c8] sm:$0xff]
        %v324 = vld [vmem:[%s1 + $0x3d0] sm:$0xff]
        %v325 = vld [vmem:[%s1 + $0x3d8] sm:$0xff]
        %v326 = vld [vmem:[%s1 + $0x3e0] sm:$0xff]
        %v327 = vld [vmem:[%s1 + $0x3e8] sm:$0xff]
        %v328 = vld [vmem:[%s1 + $0x3f0] sm:$0xff]
        %v329 = vld [vmem:[%s1 + $0x3f8] sm:$0xff]
        %v330 = vld [vmem:[%s1 + $0x400] sm:$0xff]
        %v331 = vld [vmem:[%s1 + $0x408] sm:$0xff]
        %v332 = vld [vmem:[%s1 + $0x410] sm:$0xff]
        %v333 = vld [vmem:[%s1 + $0x418] sm:$0xff]
        %v334 = vld [vmem:[%s2] sm:$0xf]
        %v335 = vld [vmem:[%s2 + $0x4] sm:$0xf]
        %v336 = vld [vmem:[%s2 + $0x8] sm:$0xf]
        %v337 = vld [vmem:[%s2 + $0xc] sm:$0xf]
        %v338 = vld [vmem:[%s2 + $0x10] sm:$0xf]
        %v339 = vld [vmem:[%s2 + $0x14] sm:$0xf]
        %v340 = vld [vmem:[%s2 + $0x18] sm:$0xf]
        %v341 = vld [vmem:[%s2 + $0x1c] sm:$0xf]
        %v342 = vld [vmem:[%s2 + $0x20] sm:$0xf]
        %v343 = vld [vmem:[%s2 + $0x24] sm:$0xf]
        %v344 = vld [vmem:[%s2 + $0x28] sm:$0xf]
        %v345 = vld [vmem:[%s2 + $0x2c] sm:$0xf]
        %v346 = vld [vmem:[%s2 + $0x30] sm:$0xf]
        %v347 = vld [vmem:[%s2 + $0x34] sm:$0xf]
        %v348 = vld [vmem:[%s2 + $0x38] sm:$0xf]
        %v349 = vld [vmem:[%s2 + $0x3c] sm:$0xf]
        %v350 = vld [vmem:[%s2 + $0x40] sm:$0xf]
        %v351 = vld [vmem:[%s2 + $0x44] sm:$0xf]
        %v352 = vld [vmem:[%s2 + $0x48] sm:$0xf]
        %v353 = vld [vmem:[%s2 + $0x4c] sm:$0xf]
        %v354 = vld [vmem:[%s2 + $0x50] sm:$0xf]
        %v355 = vld [vmem:[%s2 + $0x54] sm:$0xf]
        %v356 = vld [vmem:[%s2 + $0x58] sm:$0xf]
        %v357 = vld [vmem:[%s2 + $0x5c] sm:$0xf]
        %v358 = vld [vmem:[%s2 + $0x60] sm:$0xf]
        %v359 = vld [vmem:[%s2 + $0x64] sm:$0xf]
        %v360 = vld [vmem:[%s2 + $0x68] sm:$0xf]
        %v361 = vld [vmem:[%s2 + $0x6c] sm:$0xf]
        %v362 = vld [vmem:[%s2 + $0x70] sm:$0xf]
        %v363 = vld [vmem:[%s2 + $0x74] sm:$0xf]
        %v364 = vld [vmem:[%s2 + $0x78] sm:$0xf]
        %v365 = vld [vmem:[%s2 + $0x7c] sm:$0xf]
        %v366 = vld [vmem:[%s2 + $0x80] sm:$0xf]
        %v367 = vld [vmem:[%s2 + $0x84] sm:$0xf]
        %v368 = vld [vmem:[%s2 + $0x88] sm:$0xf]
        %v369 = vld [vmem:[%s2 + $0x8c] sm:$0xf]
        %v370 = vld [vmem:[%s2 + $0x90] sm:$0xf]
        %v371 = vld [vmem:[%s2 + $0x94] sm:$0xf]
        %v372 = vld [vmem:[%s2 + $0x98] sm:$0xf]
        %v373 = vld [vmem:[%s2 + $0x9c] sm:$0xf]
        %v374 = vld [vmem:[%s2 + $0xa0] sm:$0xf]
        %v375 = vld [vmem:[%s2 + $0xa4] sm:$0xf]
        %v376 = vld [vmem:[%s2 + $0xa8] sm:$0xf]
        %v377 = vld [vmem:[%s2 + $0xac] sm:$0xf]
        %v378 = vld [vmem:[%s2 + $0xb0] sm:$0xf]
        %v379 = vld [vmem:[%s2 + $0xb4] sm:$0xf]
        %v380 = vld [vmem:[%s2 + $0xb8] sm:$0xf]
        %v381 = vld [vmem:[%s2 + $0xbc] sm:$0xf]
        %v382 = vld [vmem:[%s2 + $0xc0] sm:$0xf]
        %v383 = vld [vmem:[%s2 + $0xc4] sm:$0xf]
        %v384 = vld [vmem:[%s2 + $0xc8] sm:$0xf]
        %v385 = vld [vmem:[%s2 + $0xcc] sm:$0xf]
        %v386 = vld [vmem:[%s2 + $0xd0] sm:$0xf]
        %v387 = vld [vmem:[%s2 + $0xd4] sm:$0xf]
        %v388 = vld [vmem:[%s2 + $0xd8] sm:$0xf]
        %v389 = vld [vmem:[%s2 + $0xdc] sm:$0xf]
        %v390 = vld [vmem:[%s2 + $0xe0] sm:$0xf]
        %v391 = vld [vmem:[%s2 + $0xe4] sm:$0xf]
        %v392 = vld [vmem:[%s2 + $0xe8] sm:$0xf]
        %v393 = vld [vmem:[%s2 + $0xec] sm:$0xf]
        %v394 = vld [vmem:[%s2 + $0xf0] sm:$0xf]
        %v395 = vld [vmem:[%s2 + $0xf4] sm:$0xf]
        %v396 = vld [vmem:[%s2 + $0xf8] sm:$0xf]
        %v397 = vld [vmem:[%s2 + $0xfc] sm:$0xf]
        %v398 = vld [vmem:[%s2 + $0x100] sm:$0xf]
        %v399 = vld [vmem:[%s2 + $0x104] sm:$0xf]
        %v400 = vld [vmem:[%s2 + $0x108] sm:$0xf]
        %v401 = vld [vmem:[%s2 + $0x10c] sm:$0xf]
        %v402 = vld [vmem:[%s2 + $0x110] sm:$0xf]
        %v403 = vld [vmem:[%s2 + $0x114] sm:$0xf]
        %v404 = vld [vmem:[%s2 + $0x118] sm:$0xf]
        %v405 = vld [vmem:[%s2 + $0x11c] sm:$0xf]
        %v406 = vld [vmem:[%s2 + $0x120] sm:$0xf]
        %v407 = vld [vmem:[%s2 + $0x124] sm:$0xf]
        %v408 = vld [vmem:[%s2 + $0x128] sm:$0xf]
        %v409 = vld [vmem:[%s2 + $0x12c] sm:$0xf]
        %v410 = vld [vmem:[%s2 + $0x130] sm:$0xf]
        %v411 = vld [vmem:[%s2 + $0x134] sm:$0xf]
        %v412 = vld [vmem:[%s2 + $0x138] sm:$0xf]
        %v413 = vld [vmem:[%s2 + $0x13c] sm:$0xf]
        %v414 = vld [vmem:[%s2 + $0x140] sm:$0xf]
        %v415 = vld [vmem:[%s2 + $0x144] sm:$0xf]
        %v416 = vld [vmem:[%s2 + $0x148] sm:$0xf]
        %v417 = vld [vmem:[%s2 + $0x14c] sm:$0xf]
        %v418 = vld [vmem:[%s2 + $0x150] sm:$0xf]
        %v419 = vld [vmem:[%s2 + $0x154] sm:$0xf]
        %v420 = vld [vmem:[%s2 + $0x158] sm:$0xf]
        %v421 = vld [vmem:[%s2 + $0x15c] sm:$0xf]
        %v422 = vld [vmem:[%s2 + $0x160] sm:$0xf]
        %v423 = vld [vmem:[%s2 + $0x164] sm:$0xf]
        %v424 = vld [vmem:[%s2 + $0x168] sm:$0xf]
        %v425 = vld [vmem:[%s2 + $0x16c] sm:$0xf]
        %v426 = vld [vmem:[%s2 + $0x170] sm:$0xf]
        %v427 = vld [vmem:[%s2 + $0x174] sm:$0xf]
        %v428 = vld [vmem:[%s2 + $0x178] sm:$0xf]
        %v429 = vld [vmem:[%s2 + $0x17c] sm:$0xf]
        %v430 = vld [vmem:[%s2 + $0x180] sm:$0xf]
        %v431 = vld [vmem:[%s2 + $0x184] sm:$0xf]
        %v432 = vld [vmem:[%s2 + $0x188] sm:$0xf]
        %v433 = vld [vmem:[%s2 + $0x18c] sm:$0xf]
        %v434 = vld [vmem:[%s2 + $0x190] sm:$0xf]
        %v435 = vld [vmem:[%s2 + $0x194] sm:$0xf]
        %v436 = vld [vmem:[%s2 + $0x198] sm:$0xf]
        %v437 = vld [vmem:[%s2 + $0x19c] sm:$0xf]
        %v438 = vld [vmem:[%s2 + $0x1a0] sm:$0xf]
        %v439 = vld [vmem:[%s2 + $0x1a4] sm:$0xf]
        %v440 = vld [vmem:[%s2 + $0x1a8] sm:$0xf]
        %v441 = vld [vmem:[%s2 + $0x1ac] sm:$0xf]
        %v442 = vld [vmem:[%s2 + $0x1b0] sm:$0xf]
        %v443 = vld [vmem:[%s2 + $0x1b4] sm:$0xf]
        %v444 = vld [vmem:[%s2 + $0x1b8] sm:$0xf]
        %v445 = vld [vmem:[%s2 + $0x1bc] sm:$0xf]
        %v446 = vld [vmem:[%s2 + $0x1c0] sm:$0xf]
        %v447 = vld [vmem:[%s2 + $0x1c4] sm:$0xf]
        %v448 = vld [vmem:[%s2 + $0x1c8] sm:$0xf]
        %v449 = vld [vmem:[%s2 + $0x1cc] sm:$0xf]
        %v450 = vld [vmem:[%s2 + $0x1d0] sm:$0xf]
        %v451 = vld [vmem:[%s2 + $0x1d4] sm:$0xf]
        %v452 = vld [vmem:[%s2 + $0x1d8] sm:$0xf]
        %v453 = vld [vmem:[%s2 + $0x1dc] sm:$0xf]
        %v454 = vld [vmem:[%s2 + $0x1e0] sm:$0xf]
        %v455 = vld [vmem:[%s2 + $0x1e4] sm:$0xf]
        %v456 = vld [vmem:[%s3] sm:$0x1]
        %v457 = vld [vmem:[%s3 + $0x1] sm:$0x1]
        %v458 = vld [vmem:[%s3 + $0x2] sm:$0x1]
        %v459 = vld [vmem:[%s3 + $0x3] sm:$0x1]
        %v460 = vld [vmem:[%s3 + $0x4] sm:$0x1]
        %v461 = vld [vmem:[%s199] sm:$0xff]
        %v462 = vld [vmem:[%s199 + $0x8] sm:$0xff]
        %v463 = vld [vmem:[%s199 + $0x10] sm:$0xff]
        %v464 = vld [vmem:[%s199 + $0x18] sm:$0xff]
        %v465 = vld [vmem:[%s199 + $0x20] sm:$0xff]
        %v466 = vld [vmem:[%s199 + $0x28] sm:$0xff]
        %v467 = vld [vmem:[%s199 + $0x30] sm:$0xff]
        %v468 = vld [vmem:[%s199 + $0x38] sm:$0xff]
        %v469 = vld [vmem:[%s199 + $0x40] sm:$0xff]
        %v470 = vld [vmem:[%s199 + $0x48] sm:$0xff]
        %v471 = vld [vmem:[%s199 + $0x50] sm:$0xff]
        %v472 = vld [vmem:[%s199 + $0x58] sm:$0xff]
        %v473 = vld [vmem:[%s199 + $0x60] sm:$0xff]
        %v474 = vld [vmem:[%s199 + $0x68] sm:$0xff]
        %v475 = vld [vmem:[%s199 + $0x70] sm:$0xff]
        %v476 = vld [vmem:[%s199 + $0x78] sm:$0xff]
        %v477 = vld [vmem:[%s199 + $0x80] sm:$0xff]
        %v478 = vld [vmem:[%s199 + $0x88] sm:$0xff]
        %v479 = vld [vmem:[%s199 + $0x90] sm:$0xff]
        %v480 = vld [vmem:[%s199 + $0x98] sm:$0xff]
        %v481 = vld [vmem:[%s199 + $0xa0] sm:$0xff]
        %v482 = vld [vmem:[%s199 + $0xa8] sm:$0xff]
        %v483 = vld [vmem:[%s199 + $0xb0] sm:$0xff]
        %v484 = vld [vmem:[%s199 + $0xb8] sm:$0xff]
        %v485 = vld [vmem:[%s199 + $0xc0] sm:$0xff]
        %v486 = vld [vmem:[%s199 + $0xc8] sm:$0xff]
        %v487 = vld [vmem:[%s199 + $0xd0] sm:$0xff]
        %v488 = vld [vmem:[%s199 + $0xd8] sm:$0xff]
        %v489 = vld [vmem:[%s199 + $0xe0] sm:$0xff]
        %v490 = vld [vmem:[%s199 + $0xe8] sm:$0xff]
        %v491 = vld [vmem:[%s199 + $0xf0] sm:$0xff]
        %v492 = vld [vmem:[%s199 + $0xf8] sm:$0xff]
        %v525 = vunpack.c.l.b16 %v461
        %v526 = vunpack.c.h.b16 %v461
        %v527 = vunpack.c.l.b16 %v462
        %v528 = vunpack.c.h.b16 %v462
        %v529 = vunpack.c.l.b16 %v463
        %v530 = vunpack.c.h.b16 %v463
        %v531 = vunpack.c.l.b16 %v464
        %v532 = vunpack.c.h.b16 %v464
        %v533 = vunpack.c.l.b16 %v465
        %v534 = vunpack.c.h.b16 %v465
        %v535 = vunpack.c.l.b16 %v466
        %v536 = vunpack.c.h.b16 %v466
        %v537 = vunpack.c.l.b16 %v467
        %v538 = vunpack.c.h.b16 %v467
        %v539 = vunpack.c.l.b16 %v468
        %v540 = vunpack.c.h.b16 %v468
        %v541 = vunpack.c.l.b16 %v469
        %v542 = vunpack.c.h.b16 %v469
        %v543 = vunpack.c.l.b16 %v470
        %v544 = vunpack.c.h.b16 %v470
        %v545 = vunpack.c.l.b16 %v471
        %v546 = vunpack.c.h.b16 %v471
        %v547 = vunpack.c.l.b16 %v472
        %v548 = vunpack.c.h.b16 %v472
        %v549 = vunpack.c.l.b16 %v473
        %v550 = vunpack.c.h.b16 %v473
        %v551 = vunpack.c.l.b16 %v474
        %v552 = vunpack.c.h.b16 %v474
        %v553 = vunpack.c.l.b16 %v475
        %v554 = vunpack.c.h.b16 %v475
        %v555 = vunpack.c.l.b16 %v476
        %v556 = vunpack.c.h.b16 %v476
        %v557 = vunpack.c.l.b16 %v477
        %v558 = vunpack.c.h.b16 %v477
        %v559 = vunpack.c.l.b16 %v478
        %v560 = vunpack.c.h.b16 %v478
        %v561 = vunpack.c.l.b16 %v479
        %v562 = vunpack.c.h.b16 %v479
        %v563 = vunpack.c.l.b16 %v480
        %v564 = vunpack.c.h.b16 %v480
        %v565 = vunpack.c.l.b16 %v481
        %v566 = vunpack.c.h.b16 %v481
        %v567 = vunpack.c.l.b16 %v482
        %v568 = vunpack.c.h.b16 %v482
        %v569 = vunpack.c.l.b16 %v483
        %v570 = vunpack.c.h.b16 %v483
        %v571 = vunpack.c.l.b16 %v484
        %v572 = vunpack.c.h.b16 %v484
        %v573 = vunpack.c.l.b16 %v485
        %v574 = vunpack.c.h.b16 %v485
        %v575 = vunpack.c.l.b16 %v486
        %v576 = vunpack.c.h.b16 %v486
        %v577 = vunpack.c.l.b16 %v487
        %v578 = vunpack.c.h.b16 %v487
        %v579 = vunpack.c.l.b16 %v488
        %v580 = vunpack.c.h.b16 %v488
        %v581 = vunpack.c.l.b16 %v489
        %v582 = vunpack.c.h.b16 %v489
        %v583 = vunpack.c.l.b16 %v490
        %v584 = vunpack.c.h.b16 %v490
        %v585 = vunpack.c.l.b16 %v491
        %v586 = vunpack.c.h.b16 %v491
        %v587 = vunpack.c.l.b16 %v492
        %v588 = vunpack.c.h.b16 %v492
        %v589 = vpack.c.b16 %v527, %v525
        %v590 = vpack.c.b16 %v528, %v526
        %v591 = vpack.c.b16 %v531, %v529
        %v592 = vpack.c.b16 %v532, %v530
        %v593 = vpack.c.b16 %v535, %v533
        %v594 = vpack.c.b16 %v536, %v534
        %v595 = vpack.c.b16 %v539, %v537
        %v596 = vpack.c.b16 %v540, %v538
        %v597 = vpack.c.b16 %v543, %v541
        %v598 = vpack.c.b16 %v544, %v542
        %v599 = vpack.c.b16 %v547, %v545
        %v600 = vpack.c.b16 %v548, %v546
        %v601 = vpack.c.b16 %v551, %v549
        %v602 = vpack.c.b16 %v552, %v550
        %v603 = vpack.c.b16 %v555, %v553
        %v604 = vpack.c.b16 %v556, %v554
        %v605 = vpack.c.b16 %v559, %v557
        %v606 = vpack.c.b16 %v560, %v558
        %v607 = vpack.c.b16 %v563, %v561
        %v608 = vpack.c.b16 %v564, %v562
        %v609 = vpack.c.b16 %v567, %v565
        %v610 = vpack.c.b16 %v568, %v566
        %v611 = vpack.c.b16 %v571, %v569
        %v612 = vpack.c.b16 %v572, %v570
        %v613 = vpack.c.b16 %v575, %v573
        %v614 = vpack.c.b16 %v576, %v574
        %v615 = vpack.c.b16 %v579, %v577
        %v616 = vpack.c.b16 %v580, %v578
        %v617 = vpack.c.b16 %v583, %v581
        %v618 = vpack.c.b16 %v584, %v582
        %v619 = vpack.c.b16 %v587, %v585
        %v620 = vpack.c.b16 %v588, %v586
        %v657 = vunpack.c.l.b16 %v202
        %v658 = vunpack.c.h.b16 %v202
        %v659 = vunpack.c.l.b16 %v203
        %v660 = vunpack.c.h.b16 %v203
        %v661 = vunpack.c.l.b16 %v204
        %v662 = vunpack.c.h.b16 %v204
        %v663 = vunpack.c.l.b16 %v205
        %v664 = vunpack.c.h.b16 %v205
        %v665 = vunpack.c.l.b16 %v206
        %v666 = vunpack.c.h.b16 %v206
        %v667 = vunpack.c.l.b16 %v207
        %v668 = vunpack.c.h.b16 %v207
        %v669 = vunpack.c.l.b16 %v208
        %v670 = vunpack.c.h.b16 %v208
        %v671 = vunpack.c.l.b16 %v209
        %v672 = vunpack.c.h.b16 %v209
        %v673 = vunpack.c.l.b16 %v210
        %v674 = vunpack.c.h.b16 %v210
        %v675 = vunpack.c.l.b16 %v211
        %v676 = vunpack.c.h.b16 %v211
        %v677 = vunpack.c.l.b16 %v212
        %v678 = vunpack.c.h.b16 %v212
        %v679 = vunpack.c.l.b16 %v213
        %v680 = vunpack.c.h.b16 %v213
        %v681 = vunpack.c.l.b16 %v214
        %v682 = vunpack.c.h.b16 %v214
        %v683 = vunpack.c.l.b16 %v215
        %v684 = vunpack.c.h.b16 %v215
        %v685 = vunpack.c.l.b16 %v216
        %v686 = vunpack.c.h.b16 %v216
        %v687 = vunpack.c.l.b16 %v217
        %v688 = vunpack.c.h.b16 %v217
        %v689 = vunpack.c.l.b16 %v218
        %v690 = vunpack.c.h.b16 %v218
        %v691 = vunpack.c.l.b16 %v219
        %v692 = vunpack.c.h.b16 %v219
        %v693 = vunpack.c.l.b16 %v220
        %v694 = vunpack.c.h.b16 %v220
        %v695 = vunpack.c.l.b16 %v221
        %v696 = vunpack.c.h.b16 %v221
        %v697 = vpack.c.b16 %v659, %v657
        %v698 = vpack.c.b16 %v660, %v658
        %v699 = vpack.c.b16 %v663, %v661
        %v700 = vpack.c.b16 %v664, %v662
        %v701 = vpack.c.b16 %v667, %v665
        %v702 = vpack.c.b16 %v668, %v666
        %v703 = vpack.c.b16 %v671, %v669
        %v704 = vpack.c.b16 %v672, %v670
        %v705 = vpack.c.b16 %v675, %v673
        %v706 = vpack.c.b16 %v676, %v674
        %v707 = vpack.c.b16 %v679, %v677
        %v708 = vpack.c.b16 %v680, %v678
        %v709 = vpack.c.b16 %v683, %v681
        %v710 = vpack.c.b16 %v684, %v682
        %v711 = vpack.c.b16 %v687, %v685
        %v712 = vpack.c.b16 %v688, %v686
        %v713 = vpack.c.b16 %v691, %v689
        %v714 = vpack.c.b16 %v692, %v690
        %v715 = vpack.c.b16 %v695, %v693
        %v716 = vpack.c.b16 %v696, %v694
        %vm737 = vcmask 261120
        %v739 = vsel %vm737, %v590, 0
        %v742 = vsel %vm737, %v592, 0
        %v745 = vsel %vm737, %v594, 0
        %v748 = vsel %vm737, %v596, 0
        %v751 = vsel %vm737, %v598, 0
        %v754 = vsel %vm737, %v600, 0
        %v757 = vsel %vm737, %v602, 0
        %v760 = vsel %vm737, %v604, 0
        %v763 = vsel %vm737, %v606, 0
        %v766 = vsel %vm737, %v608, 0
        %v769 = vsel %vm737, %v610, 0
        %v772 = vsel %vm737, %v612, 0
        %v775 = vsel %vm737, %v614, 0
        %v778 = vsel %vm737, %v616, 0
        %v781 = vsel %vm737, %v618, 0
        %v784 = vsel %vm737, %v620, 0
        %786 = vmatpush.bf16.msra.mxu0 %v711
        %787 = vmatpush.bf16.msra.mxu0 %v709
        %788 = vmatpush.bf16.msra.mxu0 %v707
        %789 = vmatpush.bf16.msra.mxu0 %v705
        %790 = vmatpush.bf16.msra.mxu0 %v703
        %791 = vmatpush.bf16.msra.mxu0 %v701
        %792 = vmatpush.bf16.msra.mxu0 %v699
        %793 = vmatpush.bf16.msra.mxu0 %v697
        %794 = vmatmul.bf16.gmra.mxu0 %v589
        %v795 = vpop.f32.mrf.mxu0
        %v796 = vadd.f32 0.0, %v795
        %v797 = vpop.f32.mrf.mxu0
        %v798 = vadd.f32 0.0, %v797
        %799 = vmatmul.bf16.gmra.mxu0 %v591
        %v800 = vpop.f32.mrf.mxu0
        %v801 = vadd.f32 0.0, %v800
        %v802 = vpop.f32.mrf.mxu0
        %v803 = vadd.f32 0.0, %v802
        %804 = vmatmul.bf16.gmra.mxu0 %v593
        %v805 = vpop.f32.mrf.mxu0
        %v806 = vadd.f32 0.0, %v805
        %v807 = vpop.f32.mrf.mxu0
        %v808 = vadd.f32 0.0, %v807
        %809 = vmatmul.bf16.gmra.mxu0 %v595
        %v810 = vpop.f32.mrf.mxu0
        %v811 = vadd.f32 0.0, %v810
        %v812 = vpop.f32.mrf.mxu0
        %v813 = vadd.f32 0.0, %v812
        %814 = vmatmul.bf16.gmra.mxu0 %v597
        %v815 = vpop.f32.mrf.mxu0
        %v816 = vadd.f32 0.0, %v815
        %v817 = vpop.f32.mrf.mxu0
        %v818 = vadd.f32 0.0, %v817
        %819 = vmatmul.bf16.gmra.mxu0 %v599
        %v820 = vpop.f32.mrf.mxu0
        %v821 = vadd.f32 0.0, %v820
        %v822 = vpop.f32.mrf.mxu0
        %v823 = vadd.f32 0.0, %v822
        %824 = vmatmul.bf16.gmra.mxu0 %v601
        %v825 = vpop.f32.mrf.mxu0
        %v826 = vadd.f32 0.0, %v825
        %v827 = vpop.f32.mrf.mxu0
        %v828 = vadd.f32 0.0, %v827
        %829 = vmatmul.bf16.gmra.mxu0 %v603
        %v830 = vpop.f32.mrf.mxu0
        %v831 = vadd.f32 0.0, %v830
        %v832 = vpop.f32.mrf.mxu0
        %v833 = vadd.f32 0.0, %v832
        %834 = vmatmul.bf16.gmra.mxu0 %v605
        %v835 = vpop.f32.mrf.mxu0
        %v836 = vadd.f32 0.0, %v835
        %v837 = vpop.f32.mrf.mxu0
        %v838 = vadd.f32 0.0, %v837
        %839 = vmatmul.bf16.gmra.mxu0 %v607
        %v840 = vpop.f32.mrf.mxu0
        %v841 = vadd.f32 0.0, %v840
        %v842 = vpop.f32.mrf.mxu0
        %v843 = vadd.f32 0.0, %v842
        %844 = vmatmul.bf16.gmra.mxu0 %v609
        %v845 = vpop.f32.mrf.mxu0
        %v846 = vadd.f32 0.0, %v845
        %v847 = vpop.f32.mrf.mxu0
        %v848 = vadd.f32 0.0, %v847
        %849 = vmatmul.bf16.gmra.mxu0 %v611
        %v850 = vpop.f32.mrf.mxu0
        %v851 = vadd.f32 0.0, %v850
        %v852 = vpop.f32.mrf.mxu0
        %v853 = vadd.f32 0.0, %v852
        %854 = vmatmul.bf16.gmra.mxu0 %v613
        %v855 = vpop.f32.mrf.mxu0
        %v856 = vadd.f32 0.0, %v855
        %v857 = vpop.f32.mrf.mxu0
        %v858 = vadd.f32 0.0, %v857
        %859 = vmatmul.bf16.gmra.mxu0 %v615
        %v860 = vpop.f32.mrf.mxu0
        %v861 = vadd.f32 0.0, %v860
        %v862 = vpop.f32.mrf.mxu0
        %v863 = vadd.f32 0.0, %v862
        %864 = vmatmul.bf16.gmra.mxu0 %v617
        %v865 = vpop.f32.mrf.mxu0
        %v866 = vadd.f32 0.0, %v865
        %v867 = vpop.f32.mrf.mxu0
        %v868 = vadd.f32 0.0, %v867
        %869 = vmatmul.bf16.gmra.mxu0 %v619
        %v870 = vpop.f32.mrf.mxu0
        %v871 = vadd.f32 0.0, %v870
        %v872 = vpop.f32.mrf.mxu0
        %v873 = vadd.f32 0.0, %v872
        %874 = vdwg.mxu0
        %875 = vmatpush.bf16.msra.mxu0 0
        %876 = vmatpush.bf16.msra.mxu0 0
        %877 = vmatpush.bf16.msra.mxu0 0
        %878 = vmatpush.bf16.msra.mxu0 0
        %879 = vmatpush.bf16.msra.mxu0 0
        %880 = vmatpush.bf16.msra.mxu0 0
        %881 = vmatpush.bf16.msra.mxu0 %v715
        %882 = vmatpush.bf16.msra.mxu0 %v713
        %883 = vmatmul.bf16.gmra.mxu0 %v739
        %v884 = vpop.f32.mrf.mxu0
        %v885 = vadd.f32 %v796, %v884
        %v886 = vpop.f32.mrf.mxu0
        %v887 = vadd.f32 %v798, %v886
        %888 = vmatmul.bf16.gmra.mxu0 %v742
        %v889 = vpop.f32.mrf.mxu0
        %v890 = vadd.f32 %v801, %v889
        %v891 = vpop.f32.mrf.mxu0
        %v892 = vadd.f32 %v803, %v891
        %893 = vmatmul.bf16.gmra.mxu0 %v745
        %v894 = vpop.f32.mrf.mxu0
        %v895 = vadd.f32 %v806, %v894
        %v896 = vpop.f32.mrf.mxu0
        %v897 = vadd.f32 %v808, %v896
        %898 = vmatmul.bf16.gmra.mxu0 %v748
        %v899 = vpop.f32.mrf.mxu0
        %v900 = vadd.f32 %v811, %v899
        %v901 = vpop.f32.mrf.mxu0
        %v902 = vadd.f32 %v813, %v901
        %903 = vmatmul.bf16.gmra.mxu0 %v751
        %v904 = vpop.f32.mrf.mxu0
        %v905 = vadd.f32 %v816, %v904
        %v906 = vpop.f32.mrf.mxu0
        %v907 = vadd.f32 %v818, %v906
        %908 = vmatmul.bf16.gmra.mxu0 %v754
        %v909 = vpop.f32.mrf.mxu0
        %v910 = vadd.f32 %v821, %v909
        %v911 = vpop.f32.mrf.mxu0
        %v912 = vadd.f32 %v823, %v911
        %913 = vmatmul.bf16.gmra.mxu0 %v757
        %v914 = vpop.f32.mrf.mxu0
        %v915 = vadd.f32 %v826, %v914
        %v916 = vpop.f32.mrf.mxu0
        %v917 = vadd.f32 %v828, %v916
        %918 = vmatmul.bf16.gmra.mxu0 %v760
        %v919 = vpop.f32.mrf.mxu0
        %v920 = vadd.f32 %v831, %v919
        %v921 = vpop.f32.mrf.mxu0
        %v922 = vadd.f32 %v833, %v921
        %923 = vmatmul.bf16.gmra.mxu0 %v763
        %v924 = vpop.f32.mrf.mxu0
        %v925 = vadd.f32 %v836, %v924
        %v926 = vpop.f32.mrf.mxu0
        %v927 = vadd.f32 %v838, %v926
        %928 = vmatmul.bf16.gmra.mxu0 %v766
        %v929 = vpop.f32.mrf.mxu0
        %v930 = vadd.f32 %v841, %v929
        %v931 = vpop.f32.mrf.mxu0
        %v932 = vadd.f32 %v843, %v931
        %933 = vmatmul.bf16.gmra.mxu0 %v769
        %v934 = vpop.f32.mrf.mxu0
        %v935 = vadd.f32 %v846, %v934
        %v936 = vpop.f32.mrf.mxu0
        %v937 = vadd.f32 %v848, %v936
        %938 = vmatmul.bf16.gmra.mxu0 %v772
        %v939 = vpop.f32.mrf.mxu0
        %v940 = vadd.f32 %v851, %v939
        %v941 = vpop.f32.mrf.mxu0
        %v942 = vadd.f32 %v853, %v941
        %943 = vmatmul.bf16.gmra.mxu0 %v775
        %v944 = vpop.f32.mrf.mxu0
        %v945 = vadd.f32 %v856, %v944
        %v946 = vpop.f32.mrf.mxu0
        %v947 = vadd.f32 %v858, %v946
        %948 = vmatmul.bf16.gmra.mxu0 %v778
        %v949 = vpop.f32.mrf.mxu0
        %v950 = vadd.f32 %v861, %v949
        %v951 = vpop.f32.mrf.mxu0
        %v952 = vadd.f32 %v863, %v951
        %953 = vmatmul.bf16.gmra.mxu0 %v781
        %v954 = vpop.f32.mrf.mxu0
        %v955 = vadd.f32 %v866, %v954
        %v956 = vpop.f32.mrf.mxu0
        %v957 = vadd.f32 %v868, %v956
        %958 = vmatmul.bf16.gmra.mxu0 %v784
        %v959 = vpop.f32.mrf.mxu0
        %v960 = vadd.f32 %v871, %v959
        %v961 = vpop.f32.mrf.mxu0
        %v962 = vadd.f32 %v873, %v961
        %963 = vdwg.mxu0
        %964 = vmatpush.bf16.msra.mxu0 %v712
        %965 = vmatpush.bf16.msra.mxu0 %v710
        %966 = vmatpush.bf16.msra.mxu0 %v708
        %967 = vmatpush.bf16.msra.mxu0 %v706
        %968 = vmatpush.bf16.msra.mxu0 %v704
        %969 = vmatpush.bf16.msra.mxu0 %v702
        %970 = vmatpush.bf16.msra.mxu0 %v700
        %971 = vmatpush.bf16.msra.mxu0 %v698
        %972 = vmatmul.bf16.gmra.mxu0 %v589
        %v973 = vpop.f32.mrf.mxu0
        %v974 = vadd.f32 0.0, %v973
        %v975 = vpop.f32.mrf.mxu0
        %v976 = vadd.f32 0.0, %v975
        %977 = vmatmul.bf16.gmra.mxu0 %v591
        %v978 = vpop.f32.mrf.mxu0
        %v979 = vadd.f32 0.0, %v978
        %v980 = vpop.f32.mrf.mxu0
        %v981 = vadd.f32 0.0, %v980
        %982 = vmatmul.bf16.gmra.mxu0 %v593
        %v983 = vpop.f32.mrf.mxu0
        %v984 = vadd.f32 0.0, %v983
        %v985 = vpop.f32.mrf.mxu0
        %v986 = vadd.f32 0.0, %v985
        %987 = vmatmul.bf16.gmra.mxu0 %v595
        %v988 = vpop.f32.mrf.mxu0
        %v989 = vadd.f32 0.0, %v988
        %v990 = vpop.f32.mrf.mxu0
        %v991 = vadd.f32 0.0, %v990
        %992 = vmatmul.bf16.gmra.mxu0 %v597
        %v993 = vpop.f32.mrf.mxu0
        %v994 = vadd.f32 0.0, %v993
        %v995 = vpop.f32.mrf.mxu0
        %v996 = vadd.f32 0.0, %v995
        %997 = vmatmul.bf16.gmra.mxu0 %v599
        %v998 = vpop.f32.mrf.mxu0
        %v999 = vadd.f32 0.0, %v998
        %v1000 = vpop.f32.mrf.mxu0
        %v1001 = vadd.f32 0.0, %v1000
        %1002 = vmatmul.bf16.gmra.mxu0 %v601
        %v1003 = vpop.f32.mrf.mxu0
        %v1004 = vadd.f32 0.0, %v1003
        %v1005 = vpop.f32.mrf.mxu0
        %v1006 = vadd.f32 0.0, %v1005
        %1007 = vmatmul.bf16.gmra.mxu0 %v603
        %v1008 = vpop.f32.mrf.mxu0
        %v1009 = vadd.f32 0.0, %v1008
        %v1010 = vpop.f32.mrf.mxu0
        %v1011 = vadd.f32 0.0, %v1010
        %1012 = vmatmul.bf16.gmra.mxu0 %v605
        %v1013 = vpop.f32.mrf.mxu0
        %v1014 = vadd.f32 0.0, %v1013
        %v1015 = vpop.f32.mrf.mxu0
        %v1016 = vadd.f32 0.0, %v1015
        %1017 = vmatmul.bf16.gmra.mxu0 %v607
        %v1018 = vpop.f32.mrf.mxu0
        %v1019 = vadd.f32 0.0, %v1018
        %v1020 = vpop.f32.mrf.mxu0
        %v1021 = vadd.f32 0.0, %v1020
        %1022 = vmatmul.bf16.gmra.mxu0 %v609
        %v1023 = vpop.f32.mrf.mxu0
        %v1024 = vadd.f32 0.0, %v1023
        %v1025 = vpop.f32.mrf.mxu0
        %v1026 = vadd.f32 0.0, %v1025
        %1027 = vmatmul.bf16.gmra.mxu0 %v611
        %v1028 = vpop.f32.mrf.mxu0
        %v1029 = vadd.f32 0.0, %v1028
        %v1030 = vpop.f32.mrf.mxu0
        %v1031 = vadd.f32 0.0, %v1030
        %1032 = vmatmul.bf16.gmra.mxu0 %v613
        %v1033 = vpop.f32.mrf.mxu0
        %v1034 = vadd.f32 0.0, %v1033
        %v1035 = vpop.f32.mrf.mxu0
        %v1036 = vadd.f32 0.0, %v1035
        %1037 = vmatmul.bf16.gmra.mxu0 %v615
        %v1038 = vpop.f32.mrf.mxu0
        %v1039 = vadd.f32 0.0, %v1038
        %v1040 = vpop.f32.mrf.mxu0
        %v1041 = vadd.f32 0.0, %v1040
        %1042 = vmatmul.bf16.gmra.mxu0 %v617
        %v1043 = vpop.f32.mrf.mxu0
        %v1044 = vadd.f32 0.0, %v1043
        %v1045 = vpop.f32.mrf.mxu0
        %v1046 = vadd.f32 0.0, %v1045
        %1047 = vmatmul.bf16.gmra.mxu0 %v619
        %v1048 = vpop.f32.mrf.mxu0
        %v1049 = vadd.f32 0.0, %v1048
        %v1050 = vpop.f32.mrf.mxu0
        %v1051 = vadd.f32 0.0, %v1050
        %1052 = vdwg.mxu0
        %1053 = vmatpush.bf16.msra.mxu0 0
        %1054 = vmatpush.bf16.msra.mxu0 0
        %1055 = vmatpush.bf16.msra.mxu0 0
        %1056 = vmatpush.bf16.msra.mxu0 0
        %1057 = vmatpush.bf16.msra.mxu0 0
        %1058 = vmatpush.bf16.msra.mxu0 0
        %1059 = vmatpush.bf16.msra.mxu0 %v716
        %1060 = vmatpush.bf16.msra.mxu0 %v714
        %1061 = vmatmul.bf16.gmra.mxu0 %v739
        %v1062 = vpop.f32.mrf.mxu0
        %v1063 = vadd.f32 %v974, %v1062
        %v1064 = vpop.f32.mrf.mxu0
        %v1065 = vadd.f32 %v976, %v1064
        %1066 = vmatmul.bf16.gmra.mxu0 %v742
        %v1067 = vpop.f32.mrf.mxu0
        %v1068 = vadd.f32 %v979, %v1067
        %v1069 = vpop.f32.mrf.mxu0
        %v1070 = vadd.f32 %v981, %v1069
        %1071 = vmatmul.bf16.gmra.mxu0 %v745
        %v1072 = vpop.f32.mrf.mxu0
        %v1073 = vadd.f32 %v984, %v1072
        %v1074 = vpop.f32.mrf.mxu0
        %v1075 = vadd.f32 %v986, %v1074
        %1076 = vmatmul.bf16.gmra.mxu0 %v748
        %v1077 = vpop.f32.mrf.mxu0
        %v1078 = vadd.f32 %v989, %v1077
        %v1079 = vpop.f32.mrf.mxu0
        %v1080 = vadd.f32 %v991, %v1079
        %1081 = vmatmul.bf16.gmra.mxu0 %v751
        %v1082 = vpop.f32.mrf.mxu0
        %v1083 = vadd.f32 %v994, %v1082
        %v1084 = vpop.f32.mrf.mxu0
        %v1085 = vadd.f32 %v996, %v1084
        %1086 = vmatmul.bf16.gmra.mxu0 %v754
        %v1087 = vpop.f32.mrf.mxu0
        %v1088 = vadd.f32 %v999, %v1087
        %v1089 = vpop.f32.mrf.mxu0
        %v1090 = vadd.f32 %v1001, %v1089
        %1091 = vmatmul.bf16.gmra.mxu0 %v757
        %v1092 = vpop.f32.mrf.mxu0
        %v1093 = vadd.f32 %v1004, %v1092
        %v1094 = vpop.f32.mrf.mxu0
        %v1095 = vadd.f32 %v1006, %v1094
        %1096 = vmatmul.bf16.gmra.mxu0 %v760
        %v1097 = vpop.f32.mrf.mxu0
        %v1098 = vadd.f32 %v1009, %v1097
        %v1099 = vpop.f32.mrf.mxu0
        %v1100 = vadd.f32 %v1011, %v1099
        %1101 = vmatmul.bf16.gmra.mxu0 %v763
        %v1102 = vpop.f32.mrf.mxu0
        %v1103 = vadd.f32 %v1014, %v1102
        %v1104 = vpop.f32.mrf.mxu0
        %v1105 = vadd.f32 %v1016, %v1104
        %1106 = vmatmul.bf16.gmra.mxu0 %v766
        %v1107 = vpop.f32.mrf.mxu0
        %v1108 = vadd.f32 %v1019, %v1107
        %v1109 = vpop.f32.mrf.mxu0
        %v1110 = vadd.f32 %v1021, %v1109
        %1111 = vmatmul.bf16.gmra.mxu0 %v769
        %v1112 = vpop.f32.mrf.mxu0
        %v1113 = vadd.f32 %v1024, %v1112
        %v1114 = vpop.f32.mrf.mxu0
        %v1115 = vadd.f32 %v1026, %v1114
        %1116 = vmatmul.bf16.gmra.mxu0 %v772
        %v1117 = vpop.f32.mrf.mxu0
        %v1118 = vadd.f32 %v1029, %v1117
        %v1119 = vpop.f32.mrf.mxu0
        %v1120 = vadd.f32 %v1031, %v1119
        %1121 = vmatmul.bf16.gmra.mxu0 %v775
        %v1122 = vpop.f32.mrf.mxu0
        %v1123 = vadd.f32 %v1034, %v1122
        %v1124 = vpop.f32.mrf.mxu0
        %v1125 = vadd.f32 %v1036, %v1124
        %1126 = vmatmul.bf16.gmra.mxu0 %v778
        %v1127 = vpop.f32.mrf.mxu0
        %v1128 = vadd.f32 %v1039, %v1127
        %v1129 = vpop.f32.mrf.mxu0
        %v1130 = vadd.f32 %v1041, %v1129
        %1131 = vmatmul.bf16.gmra.mxu0 %v781
        %v1132 = vpop.f32.mrf.mxu0
        %v1133 = vadd.f32 %v1044, %v1132
        %v1134 = vpop.f32.mrf.mxu0
        %v1135 = vadd.f32 %v1046, %v1134
        %1136 = vmatmul.bf16.gmra.mxu0 %v784
        %v1137 = vpop.f32.mrf.mxu0
        %v1138 = vadd.f32 %v1049, %v1137
        %v1139 = vpop.f32.mrf.mxu0
        %v1140 = vadd.f32 %v1051, %v1139
        %1141 = vdwg.mxu0
        %v1142 = vmax.f32 %v885, %v1063
        %v1143 = vmax.f32 %v887, %v1065
        %v1144 = vmax.f32 %v890, %v1068
        %v1145 = vmax.f32 %v892, %v1070
        %v1146 = vmax.f32 %v895, %v1073
        %v1147 = vmax.f32 %v897, %v1075
        %v1148 = vmax.f32 %v900, %v1078
        %v1149 = vmax.f32 %v902, %v1080
        %v1150 = vmax.f32 %v905, %v1083
        %v1151 = vmax.f32 %v907, %v1085
        %v1152 = vmax.f32 %v910, %v1088
        %v1153 = vmax.f32 %v912, %v1090
        %v1154 = vmax.f32 %v915, %v1093
        %v1155 = vmax.f32 %v917, %v1095
        %v1156 = vmax.f32 %v920, %v1098
        %v1157 = vmax.f32 %v922, %v1100
        %v1158 = vmax.f32 %v925, %v1103
        %v1159 = vmax.f32 %v927, %v1105
        %v1160 = vmax.f32 %v930, %v1108
        %v1161 = vmax.f32 %v932, %v1110
        %v1162 = vmax.f32 %v935, %v1113
        %v1163 = vmax.f32 %v937, %v1115
        %v1164 = vmax.f32 %v940, %v1118
        %v1165 = vmax.f32 %v942, %v1120
        %v1166 = vmax.f32 %v945, %v1123
        %v1167 = vmax.f32 %v947, %v1125
        %v1168 = vmax.f32 %v950, %v1128
        %v1169 = vmax.f32 %v952, %v1130
        %v1170 = vmax.f32 %v955, %v1133
        %v1171 = vmax.f32 %v957, %v1135
        %v1172 = vmax.f32 %v960, %v1138
        %v1173 = vmax.f32 %v962, %v1140
        %v1174 = vperm.slane %v456, 0
        %v1175 = vadd.f32 %v1142, %v1174
        %v1176 = vadd.f32 %v1143, %v1174
        %v1177 = vadd.f32 %v1144, %v1174
        %v1178 = vadd.f32 %v1145, %v1174
        %v1179 = vadd.f32 %v1146, %v1174
        %v1180 = vadd.f32 %v1147, %v1174
        %v1181 = vadd.f32 %v1148, %v1174
        %v1182 = vadd.f32 %v1149, %v1174
        %v1183 = vadd.f32 %v1150, %v1174
        %v1184 = vadd.f32 %v1151, %v1174
        %v1185 = vadd.f32 %v1152, %v1174
        %v1186 = vadd.f32 %v1153, %v1174
        %v1187 = vadd.f32 %v1154, %v1174
        %v1188 = vadd.f32 %v1155, %v1174
        %v1189 = vadd.f32 %v1156, %v1174
        %v1190 = vadd.f32 %v1157, %v1174
        %v1191 = vadd.f32 %v1158, %v1174
        %v1192 = vadd.f32 %v1159, %v1174
        %v1193 = vadd.f32 %v1160, %v1174
        %v1194 = vadd.f32 %v1161, %v1174
        %v1195 = vadd.f32 %v1162, %v1174
        %v1196 = vadd.f32 %v1163, %v1174
        %v1197 = vadd.f32 %v1164, %v1174
        %v1198 = vadd.f32 %v1165, %v1174
        %v1199 = vadd.f32 %v1166, %v1174
        %v1200 = vadd.f32 %v1167, %v1174
        %v1201 = vadd.f32 %v1168, %v1174
        %v1202 = vadd.f32 %v1169, %v1174
        %v1203 = vadd.f32 %v1170, %v1174
        %v1204 = vadd.f32 %v1171, %v1174
        %v1205 = vadd.f32 %v1172, %v1174
        %v1206 = vadd.f32 %v1173, %v1174
        %v1207 = vmax.f32 %v1175, 0.0
        %v1208 = vmax.f32 %v1176, 0.0
        %v1209 = vmax.f32 %v1177, 0.0
        %v1210 = vmax.f32 %v1178, 0.0
        %v1211 = vmax.f32 %v1179, 0.0
        %v1212 = vmax.f32 %v1180, 0.0
        %v1213 = vmax.f32 %v1181, 0.0
        %v1214 = vmax.f32 %v1182, 0.0
        %v1215 = vmax.f32 %v1183, 0.0
        %v1216 = vmax.f32 %v1184, 0.0
        %v1217 = vmax.f32 %v1185, 0.0
        %v1218 = vmax.f32 %v1186, 0.0
        %v1219 = vmax.f32 %v1187, 0.0
        %v1220 = vmax.f32 %v1188, 0.0
        %v1221 = vmax.f32 %v1189, 0.0
        %v1222 = vmax.f32 %v1190, 0.0
        %v1223 = vmax.f32 %v1191, 0.0
        %v1224 = vmax.f32 %v1192, 0.0
        %v1225 = vmax.f32 %v1193, 0.0
        %v1226 = vmax.f32 %v1194, 0.0
        %v1227 = vmax.f32 %v1195, 0.0
        %v1228 = vmax.f32 %v1196, 0.0
        %v1229 = vmax.f32 %v1197, 0.0
        %v1230 = vmax.f32 %v1198, 0.0
        %v1231 = vmax.f32 %v1199, 0.0
        %v1232 = vmax.f32 %v1200, 0.0
        %v1233 = vmax.f32 %v1201, 0.0
        %v1234 = vmax.f32 %v1202, 0.0
        %v1235 = vmax.f32 %v1203, 0.0
        %v1236 = vmax.f32 %v1204, 0.0
        %v1237 = vmax.f32 %v1205, 0.0
        %v1238 = vmax.f32 %v1206, 0.0
        %v1239 = vpack.c.bf16 %v1208, %v1207
        %v1240 = vpack.c.bf16 %v1210, %v1209
        %v1241 = vpack.c.bf16 %v1212, %v1211
        %v1242 = vpack.c.bf16 %v1214, %v1213
        %v1243 = vpack.c.bf16 %v1216, %v1215
        %v1244 = vpack.c.bf16 %v1218, %v1217
        %v1245 = vpack.c.bf16 %v1220, %v1219
        %v1246 = vpack.c.bf16 %v1222, %v1221
        %v1247 = vpack.c.bf16 %v1224, %v1223
        %v1248 = vpack.c.bf16 %v1226, %v1225
        %v1249 = vpack.c.bf16 %v1228, %v1227
        %v1250 = vpack.c.bf16 %v1230, %v1229
        %v1251 = vpack.c.bf16 %v1232, %v1231
        %v1252 = vpack.c.bf16 %v1234, %v1233
        %v1253 = vpack.c.bf16 %v1236, %v1235
        %v1254 = vpack.c.bf16 %v1238, %v1237
        %v1287 = vunpack.c.l.b16 %v222
        %v1288 = vunpack.c.h.b16 %v222
        %v1289 = vunpack.c.l.b16 %v223
        %v1290 = vunpack.c.h.b16 %v223
        %v1291 = vunpack.c.l.b16 %v224
        %v1292 = vunpack.c.h.b16 %v224
        %v1293 = vunpack.c.l.b16 %v225
        %v1294 = vunpack.c.h.b16 %v225
        %v1295 = vunpack.c.l.b16 %v226
        %v1296 = vunpack.c.h.b16 %v226
        %v1297 = vunpack.c.l.b16 %v227
        %v1298 = vunpack.c.h.b16 %v227
        %v1299 = vunpack.c.l.b16 %v228
        %v1300 = vunpack.c.h.b16 %v228
        %v1301 = vunpack.c.l.b16 %v229
        %v1302 = vunpack.c.h.b16 %v229
        %v1303 = vunpack.c.l.b16 %v230
        %v1304 = vunpack.c.h.b16 %v230
        %v1305 = vunpack.c.l.b16 %v231
        %v1306 = vunpack.c.h.b16 %v231
        %v1307 = vunpack.c.l.b16 %v232
        %v1308 = vunpack.c.h.b16 %v232
        %v1309 = vunpack.c.l.b16 %v233
        %v1310 = vunpack.c.h.b16 %v233
        %v1311 = vunpack.c.l.b16 %v234
        %v1312 = vunpack.c.h.b16 %v234
        %v1313 = vunpack.c.l.b16 %v235
        %v1314 = vunpack.c.h.b16 %v235
        %v1315 = vunpack.c.l.b16 %v236
        %v1316 = vunpack.c.h.b16 %v236
        %v1317 = vunpack.c.l.b16 %v237
        %v1318 = vunpack.c.h.b16 %v237
        %v1319 = vunpack.c.l.b16 %v238
        %v1320 = vunpack.c.h.b16 %v238
        %v1321 = vunpack.c.l.b16 %v239
        %v1322 = vunpack.c.h.b16 %v239
        %v1323 = vunpack.c.l.b16 %v240
        %v1324 = vunpack.c.h.b16 %v240
        %v1325 = vunpack.c.l.b16 %v241
        %v1326 = vunpack.c.h.b16 %v241
        %v1327 = vunpack.c.l.b16 %v242
        %v1328 = vunpack.c.h.b16 %v242
        %v1329 = vunpack.c.l.b16 %v243
        %v1330 = vunpack.c.h.b16 %v243
        %v1331 = vunpack.c.l.b16 %v244
        %v1332 = vunpack.c.h.b16 %v244
        %v1333 = vunpack.c.l.b16 %v245
        %v1334 = vunpack.c.h.b16 %v245
        %v1335 = vunpack.c.l.b16 %v246
        %v1336 = vunpack.c.h.b16 %v246
        %v1337 = vunpack.c.l.b16 %v247
        %v1338 = vunpack.c.h.b16 %v247
        %v1339 = vunpack.c.l.b16 %v248
        %v1340 = vunpack.c.h.b16 %v248
        %v1341 = vunpack.c.l.b16 %v249
        %v1342 = vunpack.c.h.b16 %v249
        %v1343 = vunpack.c.l.b16 %v250
        %v1344 = vunpack.c.h.b16 %v250
        %v1345 = vunpack.c.l.b16 %v251
        %v1346 = vunpack.c.h.b16 %v251
        %v1347 = vunpack.c.l.b16 %v252
        %v1348 = vunpack.c.h.b16 %v252
        %v1349 = vunpack.c.l.b16 %v253
        %v1350 = vunpack.c.h.b16 %v253
        %v1351 = vpack.c.b16 %v1289, %v1287
        %v1352 = vpack.c.b16 %v1290, %v1288
        %v1353 = vpack.c.b16 %v1293, %v1291
        %v1354 = vpack.c.b16 %v1294, %v1292
        %v1355 = vpack.c.b16 %v1297, %v1295
        %v1356 = vpack.c.b16 %v1298, %v1296
        %v1357 = vpack.c.b16 %v1301, %v1299
        %v1358 = vpack.c.b16 %v1302, %v1300
        %v1359 = vpack.c.b16 %v1305, %v1303
        %v1360 = vpack.c.b16 %v1306, %v1304
        %v1361 = vpack.c.b16 %v1309, %v1307
        %v1362 = vpack.c.b16 %v1310, %v1308
        %v1363 = vpack.c.b16 %v1313, %v1311
        %v1364 = vpack.c.b16 %v1314, %v1312
        %v1365 = vpack.c.b16 %v1317, %v1315
        %v1366 = vpack.c.b16 %v1318, %v1316
        %v1367 = vpack.c.b16 %v1321, %v1319
        %v1368 = vpack.c.b16 %v1322, %v1320
        %v1369 = vpack.c.b16 %v1325, %v1323
        %v1370 = vpack.c.b16 %v1326, %v1324
        %v1371 = vpack.c.b16 %v1329, %v1327
        %v1372 = vpack.c.b16 %v1330, %v1328
        %v1373 = vpack.c.b16 %v1333, %v1331
        %v1374 = vpack.c.b16 %v1334, %v1332
        %v1375 = vpack.c.b16 %v1337, %v1335
        %v1376 = vpack.c.b16 %v1338, %v1336
        %v1377 = vpack.c.b16 %v1341, %v1339
        %v1378 = vpack.c.b16 %v1342, %v1340
        %v1379 = vpack.c.b16 %v1345, %v1343
        %v1380 = vpack.c.b16 %v1346, %v1344
        %v1381 = vpack.c.b16 %v1349, %v1347
        %v1382 = vpack.c.b16 %v1350, %v1348
        %1415 = vmatpush.bf16.msra.mxu0 %v1246
        %1416 = vmatpush.bf16.msra.mxu0 %v1245
        %1417 = vmatpush.bf16.msra.mxu0 %v1244
        %1418 = vmatpush.bf16.msra.mxu0 %v1243
        %1419 = vmatpush.bf16.msra.mxu0 %v1242
        %1420 = vmatpush.bf16.msra.mxu0 %v1241
        %1421 = vmatpush.bf16.msra.mxu0 %v1240
        %1422 = vmatpush.bf16.msra.mxu0 %v1239
        %1423 = vmatmul.bf16.gmra.mxu0 %v1351
        %v1424 = vpop.f32.mrf.mxu0
        %v1425 = vadd.f32 0.0, %v1424
        %v1426 = vpop.f32.mrf.mxu0
        %v1427 = vadd.f32 0.0, %v1426
        %1428 = vmatmul.bf16.gmra.mxu0 %v1353
        %v1429 = vpop.f32.mrf.mxu0
        %v1430 = vadd.f32 0.0, %v1429
        %v1431 = vpop.f32.mrf.mxu0
        %v1432 = vadd.f32 0.0, %v1431
        %1433 = vmatmul.bf16.gmra.mxu0 %v1355
        %v1434 = vpop.f32.mrf.mxu0
        %v1435 = vadd.f32 0.0, %v1434
        %v1436 = vpop.f32.mrf.mxu0
        %v1437 = vadd.f32 0.0, %v1436
        %1438 = vmatmul.bf16.gmra.mxu0 %v1357
        %v1439 = vpop.f32.mrf.mxu0
        %v1440 = vadd.f32 0.0, %v1439
        %v1441 = vpop.f32.mrf.mxu0
        %v1442 = vadd.f32 0.0, %v1441
        %1443 = vmatmul.bf16.gmra.mxu0 %v1359
        %v1444 = vpop.f32.mrf.mxu0
        %v1445 = vadd.f32 0.0, %v1444
        %v1446 = vpop.f32.mrf.mxu0
        %v1447 = vadd.f32 0.0, %v1446
        %1448 = vmatmul.bf16.gmra.mxu0 %v1361
        %v1449 = vpop.f32.mrf.mxu0
        %v1450 = vadd.f32 0.0, %v1449
        %v1451 = vpop.f32.mrf.mxu0
        %v1452 = vadd.f32 0.0, %v1451
        %1453 = vmatmul.bf16.gmra.mxu0 %v1363
        %v1454 = vpop.f32.mrf.mxu0
        %v1455 = vadd.f32 0.0, %v1454
        %v1456 = vpop.f32.mrf.mxu0
        %v1457 = vadd.f32 0.0, %v1456
        %1458 = vmatmul.bf16.gmra.mxu0 %v1365
        %v1459 = vpop.f32.mrf.mxu0
        %v1460 = vadd.f32 0.0, %v1459
        %v1461 = vpop.f32.mrf.mxu0
        %v1462 = vadd.f32 0.0, %v1461
        %1463 = vmatmul.bf16.gmra.mxu0 %v1367
        %v1464 = vpop.f32.mrf.mxu0
        %v1465 = vadd.f32 0.0, %v1464
        %v1466 = vpop.f32.mrf.mxu0
        %v1467 = vadd.f32 0.0, %v1466
        %1468 = vmatmul.bf16.gmra.mxu0 %v1369
        %v1469 = vpop.f32.mrf.mxu0
        %v1470 = vadd.f32 0.0, %v1469
        %v1471 = vpop.f32.mrf.mxu0
        %v1472 = vadd.f32 0.0, %v1471
        %1473 = vmatmul.bf16.gmra.mxu0 %v1371
        %v1474 = vpop.f32.mrf.mxu0
        %v1475 = vadd.f32 0.0, %v1474
        %v1476 = vpop.f32.mrf.mxu0
        %v1477 = vadd.f32 0.0, %v1476
        %1478 = vmatmul.bf16.gmra.mxu0 %v1373
        %v1479 = vpop.f32.mrf.mxu0
        %v1480 = vadd.f32 0.0, %v1479
        %v1481 = vpop.f32.mrf.mxu0
        %v1482 = vadd.f32 0.0, %v1481
        %1483 = vmatmul.bf16.gmra.mxu0 %v1375
        %v1484 = vpop.f32.mrf.mxu0
        %v1485 = vadd.f32 0.0, %v1484
        %v1486 = vpop.f32.mrf.mxu0
        %v1487 = vadd.f32 0.0, %v1486
        %1488 = vmatmul.bf16.gmra.mxu0 %v1377
        %v1489 = vpop.f32.mrf.mxu0
        %v1490 = vadd.f32 0.0, %v1489
        %v1491 = vpop.f32.mrf.mxu0
        %v1492 = vadd.f32 0.0, %v1491
        %1493 = vmatmul.bf16.gmra.mxu0 %v1379
        %v1494 = vpop.f32.mrf.mxu0
        %v1495 = vadd.f32 0.0, %v1494
        %v1496 = vpop.f32.mrf.mxu0
        %v1497 = vadd.f32 0.0, %v1496
        %1498 = vmatmul.bf16.gmra.mxu0 %v1381
        %v1499 = vpop.f32.mrf.mxu0
        %v1500 = vadd.f32 0.0, %v1499
        %v1501 = vpop.f32.mrf.mxu0
        %v1502 = vadd.f32 0.0, %v1501
        %1503 = vdwg.mxu0
        %1504 = vmatpush.bf16.msra.mxu0 %v1254
        %1505 = vmatpush.bf16.msra.mxu0 %v1253
        %1506 = vmatpush.bf16.msra.mxu0 %v1252
        %1507 = vmatpush.bf16.msra.mxu0 %v1251
        %1508 = vmatpush.bf16.msra.mxu0 %v1250
        %1509 = vmatpush.bf16.msra.mxu0 %v1249
        %1510 = vmatpush.bf16.msra.mxu0 %v1248
        %1511 = vmatpush.bf16.msra.mxu0 %v1247
        %1512 = vmatmul.bf16.gmra.mxu0 %v1352
        %v1513 = vpop.f32.mrf.mxu0
        %v1514 = vadd.f32 %v1425, %v1513
        %v1515 = vpop.f32.mrf.mxu0
        %v1516 = vadd.f32 %v1427, %v1515
        %1517 = vmatmul.bf16.gmra.mxu0 %v1354
        %v1518 = vpop.f32.mrf.mxu0
        %v1519 = vadd.f32 %v1430, %v1518
        %v1520 = vpop.f32.mrf.mxu0
        %v1521 = vadd.f32 %v1432, %v1520
        %1522 = vmatmul.bf16.gmra.mxu0 %v1356
        %v1523 = vpop.f32.mrf.mxu0
        %v1524 = vadd.f32 %v1435, %v1523
        %v1525 = vpop.f32.mrf.mxu0
        %v1526 = vadd.f32 %v1437, %v1525
        %1527 = vmatmul.bf16.gmra.mxu0 %v1358
        %v1528 = vpop.f32.mrf.mxu0
        %v1529 = vadd.f32 %v1440, %v1528
        %v1530 = vpop.f32.mrf.mxu0
        %v1531 = vadd.f32 %v1442, %v1530
        %1532 = vmatmul.bf16.gmra.mxu0 %v1360
        %v1533 = vpop.f32.mrf.mxu0
        %v1534 = vadd.f32 %v1445, %v1533
        %v1535 = vpop.f32.mrf.mxu0
        %v1536 = vadd.f32 %v1447, %v1535
        %1537 = vmatmul.bf16.gmra.mxu0 %v1362
        %v1538 = vpop.f32.mrf.mxu0
        %v1539 = vadd.f32 %v1450, %v1538
        %v1540 = vpop.f32.mrf.mxu0
        %v1541 = vadd.f32 %v1452, %v1540
        %1542 = vmatmul.bf16.gmra.mxu0 %v1364
        %v1543 = vpop.f32.mrf.mxu0
        %v1544 = vadd.f32 %v1455, %v1543
        %v1545 = vpop.f32.mrf.mxu0
        %v1546 = vadd.f32 %v1457, %v1545
        %1547 = vmatmul.bf16.gmra.mxu0 %v1366
        %v1548 = vpop.f32.mrf.mxu0
        %v1549 = vadd.f32 %v1460, %v1548
        %v1550 = vpop.f32.mrf.mxu0
        %v1551 = vadd.f32 %v1462, %v1550
        %1552 = vmatmul.bf16.gmra.mxu0 %v1368
        %v1553 = vpop.f32.mrf.mxu0
        %v1554 = vadd.f32 %v1465, %v1553
        %v1555 = vpop.f32.mrf.mxu0
        %v1556 = vadd.f32 %v1467, %v1555
        %1557 = vmatmul.bf16.gmra.mxu0 %v1370
        %v1558 = vpop.f32.mrf.mxu0
        %v1559 = vadd.f32 %v1470, %v1558
        %v1560 = vpop.f32.mrf.mxu0
        %v1561 = vadd.f32 %v1472, %v1560
        %1562 = vmatmul.bf16.gmra.mxu0 %v1372
        %v1563 = vpop.f32.mrf.mxu0
        %v1564 = vadd.f32 %v1475, %v1563
        %v1565 = vpop.f32.mrf.mxu0
        %v1566 = vadd.f32 %v1477, %v1565
        %1567 = vmatmul.bf16.gmra.mxu0 %v1374
        %v1568 = vpop.f32.mrf.mxu0
        %v1569 = vadd.f32 %v1480, %v1568
        %v1570 = vpop.f32.mrf.mxu0
        %v1571 = vadd.f32 %v1482, %v1570
        %1572 = vmatmul.bf16.gmra.mxu0 %v1376
        %v1573 = vpop.f32.mrf.mxu0
        %v1574 = vadd.f32 %v1485, %v1573
        %v1575 = vpop.f32.mrf.mxu0
        %v1576 = vadd.f32 %v1487, %v1575
        %1577 = vmatmul.bf16.gmra.mxu0 %v1378
        %v1578 = vpop.f32.mrf.mxu0
        %v1579 = vadd.f32 %v1490, %v1578
        %v1580 = vpop.f32.mrf.mxu0
        %v1581 = vadd.f32 %v1492, %v1580
        %1582 = vmatmul.bf16.gmra.mxu0 %v1380
        %v1583 = vpop.f32.mrf.mxu0
        %v1584 = vadd.f32 %v1495, %v1583
        %v1585 = vpop.f32.mrf.mxu0
        %v1586 = vadd.f32 %v1497, %v1585
        %1587 = vmatmul.bf16.gmra.mxu0 %v1382
        %v1588 = vpop.f32.mrf.mxu0
        %v1589 = vadd.f32 %v1500, %v1588
        %v1590 = vpop.f32.mrf.mxu0
        %v1591 = vadd.f32 %v1502, %v1590
        %1592 = vdwg.mxu0
        %v1593 = vmax.f32 %v1514, %v1554
        %v1594 = vmax.f32 %v1516, %v1556
        %v1595 = vmax.f32 %v1519, %v1559
        %v1596 = vmax.f32 %v1521, %v1561
        %v1597 = vmax.f32 %v1524, %v1564
        %v1598 = vmax.f32 %v1526, %v1566
        %v1599 = vmax.f32 %v1529, %v1569
        %v1600 = vmax.f32 %v1531, %v1571
        %v1601 = vmax.f32 %v1534, %v1574
        %v1602 = vmax.f32 %v1536, %v1576
        %v1603 = vmax.f32 %v1539, %v1579
        %v1604 = vmax.f32 %v1541, %v1581
        %v1605 = vmax.f32 %v1544, %v1584
        %v1606 = vmax.f32 %v1546, %v1586
        %v1607 = vmax.f32 %v1549, %v1589
        %v1608 = vmax.f32 %v1551, %v1591
        %vm1626 = vcmask 1046528
        %v1627 = vrot.slane %v1593, 1
        %v1628 = vrot.slane %v1594, 1
        %v1629 = vsel %vm1626, %v1627, %v1628
        %v1630 = vrot.slane %v1595, 1
        %v1631 = vsel %vm1626, %v1628, %v1630
        %v1632 = vrot.slane %v1596, 1
        %v1633 = vsel %vm1626, %v1630, %v1632
        %v1634 = vrot.slane %v1597, 1
        %v1635 = vsel %vm1626, %v1632, %v1634
        %v1636 = vrot.slane %v1598, 1
        %v1637 = vsel %vm1626, %v1634, %v1636
        %v1638 = vrot.slane %v1599, 1
        %v1639 = vsel %vm1626, %v1636, %v1638
        %v1640 = vrot.slane %v1600, 1
        %v1641 = vsel %vm1626, %v1638, %v1640
        %v1642 = vrot.slane %v1601, 1
        %v1643 = vsel %vm1626, %v1640, %v1642
        %v1644 = vrot.slane %v1602, 1
        %v1645 = vsel %vm1626, %v1642, %v1644
        %v1646 = vrot.slane %v1603, 1
        %v1647 = vsel %vm1626, %v1644, %v1646
        %v1648 = vrot.slane %v1604, 1
        %v1649 = vsel %vm1626, %v1646, %v1648
        %v1650 = vrot.slane %v1605, 1
        %v1651 = vsel %vm1626, %v1648, %v1650
        %v1652 = vrot.slane %v1606, 1
        %v1653 = vsel %vm1626, %v1650, %v1652
        %v1654 = vrot.slane %v1607, 1
        %v1655 = vsel %vm1626, %v1652, %v1654
        %v1656 = vrot.slane %v1608, 1
        %v1657 = vsel %vm1626, %v1654, %v1656
        %v1658 = vrot.slane 0.0, 1
        %v1659 = vsel %vm1626, %v1656, %v1658
        %vm1676 = vcmask 1045504
        %v1677 = vrot.slane %v1593, 2
        %v1678 = vrot.slane %v1594, 2
        %v1679 = vsel %vm1676, %v1677, %v1678
        %v1680 = vrot.slane %v1595, 2
        %v1681 = vsel %vm1676, %v1678, %v1680
        %v1682 = vrot.slane %v1596, 2
        %v1683 = vsel %vm1676, %v1680, %v1682
        %v1684 = vrot.slane %v1597, 2
        %v1685 = vsel %vm1676, %v1682, %v1684
        %v1686 = vrot.slane %v1598, 2
        %v1687 = vsel %vm1676, %v1684, %v1686
        %v1688 = vrot.slane %v1599, 2
        %v1689 = vsel %vm1676, %v1686, %v1688
        %v1690 = vrot.slane %v1600, 2
        %v1691 = vsel %vm1676, %v1688, %v1690
        %v1692 = vrot.slane %v1601, 2
        %v1693 = vsel %vm1676, %v1690, %v1692
        %v1694 = vrot.slane %v1602, 2
        %v1695 = vsel %vm1676, %v1692, %v1694
        %v1696 = vrot.slane %v1603, 2
        %v1697 = vsel %vm1676, %v1694, %v1696
        %v1698 = vrot.slane %v1604, 2
        %v1699 = vsel %vm1676, %v1696, %v1698
        %v1700 = vrot.slane %v1605, 2
        %v1701 = vsel %vm1676, %v1698, %v1700
        %v1702 = vrot.slane %v1606, 2
        %v1703 = vsel %vm1676, %v1700, %v1702
        %v1704 = vrot.slane %v1607, 2
        %v1705 = vsel %vm1676, %v1702, %v1704
        %v1706 = vrot.slane %v1608, 2
        %v1707 = vsel %vm1676, %v1704, %v1706
        %v1708 = vrot.slane 0.0, 2
        %v1709 = vsel %vm1676, %v1706, %v1708
        %vm1726 = vcmask 1044480
        %v1727 = vrot.slane %v1593, 3
        %v1728 = vrot.slane %v1594, 3
        %v1729 = vsel %vm1726, %v1727, %v1728
        %v1730 = vrot.slane %v1595, 3
        %v1731 = vsel %vm1726, %v1728, %v1730
        %v1732 = vrot.slane %v1596, 3
        %v1733 = vsel %vm1726, %v1730, %v1732
        %v1734 = vrot.slane %v1597, 3
        %v1735 = vsel %vm1726, %v1732, %v1734
        %v1736 = vrot.slane %v1598, 3
        %v1737 = vsel %vm1726, %v1734, %v1736
        %v1738 = vrot.slane %v1599, 3
        %v1739 = vsel %vm1726, %v1736, %v1738
        %v1740 = vrot.slane %v1600, 3
        %v1741 = vsel %vm1726, %v1738, %v1740
        %v1742 = vrot.slane %v1601, 3
        %v1743 = vsel %vm1726, %v1740, %v1742
        %v1744 = vrot.slane %v1602, 3
        %v1745 = vsel %vm1726, %v1742, %v1744
        %v1746 = vrot.slane %v1603, 3
        %v1747 = vsel %vm1726, %v1744, %v1746
        %v1748 = vrot.slane %v1604, 3
        %v1749 = vsel %vm1726, %v1746, %v1748
        %v1750 = vrot.slane %v1605, 3
        %v1751 = vsel %vm1726, %v1748, %v1750
        %v1752 = vrot.slane %v1606, 3
        %v1753 = vsel %vm1726, %v1750, %v1752
        %v1754 = vrot.slane %v1607, 3
        %v1755 = vsel %vm1726, %v1752, %v1754
        %v1756 = vrot.slane %v1608, 3
        %v1757 = vsel %vm1726, %v1754, %v1756
        %v1758 = vrot.slane 0.0, 3
        %v1759 = vsel %vm1726, %v1756, %v1758
        %vm1776 = vcmask 1043456
        %v1777 = vrot.slane %v1593, 4
        %v1778 = vrot.slane %v1594, 4
        %v1779 = vsel %vm1776, %v1777, %v1778
        %v1780 = vrot.slane %v1595, 4
        %v1781 = vsel %vm1776, %v1778, %v1780
        %v1782 = vrot.slane %v1596, 4
        %v1783 = vsel %vm1776, %v1780, %v1782
        %v1784 = vrot.slane %v1597, 4
        %v1785 = vsel %vm1776, %v1782, %v1784
        %v1786 = vrot.slane %v1598, 4
        %v1787 = vsel %vm1776, %v1784, %v1786
        %v1788 = vrot.slane %v1599, 4
        %v1789 = vsel %vm1776, %v1786, %v1788
        %v1790 = vrot.slane %v1600, 4
        %v1791 = vsel %vm1776, %v1788, %v1790
        %v1792 = vrot.slane %v1601, 4
        %v1793 = vsel %vm1776, %v1790, %v1792
        %v1794 = vrot.slane %v1602, 4
        %v1795 = vsel %vm1776, %v1792, %v1794
        %v1796 = vrot.slane %v1603, 4
        %v1797 = vsel %vm1776, %v1794, %v1796
        %v1798 = vrot.slane %v1604, 4
        %v1799 = vsel %vm1776, %v1796, %v1798
        %v1800 = vrot.slane %v1605, 4
        %v1801 = vsel %vm1776, %v1798, %v1800
        %v1802 = vrot.slane %v1606, 4
        %v1803 = vsel %vm1776, %v1800, %v1802
        %v1804 = vrot.slane %v1607, 4
        %v1805 = vsel %vm1776, %v1802, %v1804
        %v1806 = vrot.slane %v1608, 4
        %v1807 = vsel %vm1776, %v1804, %v1806
        %v1808 = vrot.slane 0.0, 4
        %v1809 = vsel %vm1776, %v1806, %v1808
        %v1826 = vpack.c.bf16 %v1594, %v1593
        %v1827 = vpack.c.bf16 %v1631, %v1629
        %v1828 = vpack.c.bf16 %v1681, %v1679
        %v1829 = vpack.c.bf16 %v1731, %v1729
        %v1830 = vpack.c.bf16 %v1781, %v1779
        %v1831 = vpack.c.bf16 %v1596, %v1595
        %v1832 = vpack.c.bf16 %v1635, %v1633
        %v1833 = vpack.c.bf16 %v1685, %v1683
        %v1834 = vpack.c.bf16 %v1735, %v1733
        %v1835 = vpack.c.bf16 %v1785, %v1783
        %v1836 = vpack.c.bf16 %v1598, %v1597
        %v1837 = vpack.c.bf16 %v1639, %v1637
        %v1838 = vpack.c.bf16 %v1689, %v1687
        %v1839 = vpack.c.bf16 %v1739, %v1737
        %v1840 = vpack.c.bf16 %v1789, %v1787
        %v1841 = vpack.c.bf16 %v1600, %v1599
        %v1842 = vpack.c.bf16 %v1643, %v1641
        %v1843 = vpack.c.bf16 %v1693, %v1691
        %v1844 = vpack.c.bf16 %v1743, %v1741
        %v1845 = vpack.c.bf16 %v1793, %v1791
        %v1846 = vpack.c.bf16 %v1602, %v1601
        %v1847 = vpack.c.bf16 %v1647, %v1645
        %v1848 = vpack.c.bf16 %v1697, %v1695
        %v1849 = vpack.c.bf16 %v1747, %v1745
        %v1850 = vpack.c.bf16 %v1797, %v1795
        %v1851 = vpack.c.bf16 %v1604, %v1603
        %v1852 = vpack.c.bf16 %v1651, %v1649
        %v1853 = vpack.c.bf16 %v1701, %v1699
        %v1854 = vpack.c.bf16 %v1751, %v1749
        %v1855 = vpack.c.bf16 %v1801, %v1799
        %v1856 = vpack.c.bf16 %v1606, %v1605
        %v1857 = vpack.c.bf16 %v1655, %v1653
        %v1858 = vpack.c.bf16 %v1705, %v1703
        %v1859 = vpack.c.bf16 %v1755, %v1753
        %v1860 = vpack.c.bf16 %v1805, %v1803
        %v1861 = vpack.c.bf16 %v1608, %v1607
        %v1862 = vpack.c.bf16 %v1659, %v1657
        %v1863 = vpack.c.bf16 %v1709, %v1707
        %v1864 = vpack.c.bf16 %v1759, %v1757
        %v1865 = vpack.c.bf16 %v1809, %v1807
        %v1946 = vunpack.c.l.b16 %v254
        %v1947 = vunpack.c.h.b16 %v254
        %v1948 = vunpack.c.l.b16 %v255
        %v1949 = vunpack.c.h.b16 %v255
        %v1950 = vunpack.c.l.b16 %v256
        %v1951 = vunpack.c.h.b16 %v256
        %v1952 = vunpack.c.l.b16 %v257
        %v1953 = vunpack.c.h.b16 %v257
        %v1954 = vunpack.c.l.b16 %v258
        %v1955 = vunpack.c.h.b16 %v258
        %v1956 = vunpack.c.l.b16 %v259
        %v1957 = vunpack.c.h.b16 %v259
        %v1958 = vunpack.c.l.b16 %v260
        %v1959 = vunpack.c.h.b16 %v260
        %v1960 = vunpack.c.l.b16 %v261
        %v1961 = vunpack.c.h.b16 %v261
        %v1962 = vunpack.c.l.b16 %v262
        %v1963 = vunpack.c.h.b16 %v262
        %v1964 = vunpack.c.l.b16 %v263
        %v1965 = vunpack.c.h.b16 %v263
        %v1966 = vunpack.c.l.b16 %v264
        %v1967 = vunpack.c.h.b16 %v264
        %v1968 = vunpack.c.l.b16 %v265
        %v1969 = vunpack.c.h.b16 %v265
        %v1970 = vunpack.c.l.b16 %v266
        %v1971 = vunpack.c.h.b16 %v266
        %v1972 = vunpack.c.l.b16 %v267
        %v1973 = vunpack.c.h.b16 %v267
        %v1974 = vunpack.c.l.b16 %v268
        %v1975 = vunpack.c.h.b16 %v268
        %v1976 = vunpack.c.l.b16 %v269
        %v1977 = vunpack.c.h.b16 %v269
        %v1978 = vunpack.c.l.b16 %v270
        %v1979 = vunpack.c.h.b16 %v270
        %v1980 = vunpack.c.l.b16 %v271
        %v1981 = vunpack.c.h.b16 %v271
        %v1982 = vunpack.c.l.b16 %v272
        %v1983 = vunpack.c.h.b16 %v272
        %v1984 = vunpack.c.l.b16 %v273
        %v1985 = vunpack.c.h.b16 %v273
        %v1986 = vunpack.c.l.b16 %v274
        %v1987 = vunpack.c.h.b16 %v274
        %v1988 = vunpack.c.l.b16 %v275
        %v1989 = vunpack.c.h.b16 %v275
        %v1990 = vunpack.c.l.b16 %v276
        %v1991 = vunpack.c.h.b16 %v276
        %v1992 = vunpack.c.l.b16 %v277
        %v1993 = vunpack.c.h.b16 %v277
        %v1994 = vunpack.c.l.b16 %v278
        %v1995 = vunpack.c.h.b16 %v278
        %v1996 = vunpack.c.l.b16 %v279
        %v1997 = vunpack.c.h.b16 %v279
        %v1998 = vunpack.c.l.b16 %v280
        %v1999 = vunpack.c.h.b16 %v280
        %v2000 = vunpack.c.l.b16 %v281
        %v2001 = vunpack.c.h.b16 %v281
        %v2002 = vunpack.c.l.b16 %v282
        %v2003 = vunpack.c.h.b16 %v282
        %v2004 = vunpack.c.l.b16 %v283
        %v2005 = vunpack.c.h.b16 %v283
        %v2006 = vunpack.c.l.b16 %v284
        %v2007 = vunpack.c.h.b16 %v284
        %v2008 = vunpack.c.l.b16 %v285
        %v2009 = vunpack.c.h.b16 %v285
        %v2010 = vunpack.c.l.b16 %v286
        %v2011 = vunpack.c.h.b16 %v286
        %v2012 = vunpack.c.l.b16 %v287
        %v2013 = vunpack.c.h.b16 %v287
        %v2014 = vunpack.c.l.b16 %v288
        %v2015 = vunpack.c.h.b16 %v288
        %v2016 = vunpack.c.l.b16 %v289
        %v2017 = vunpack.c.h.b16 %v289
        %v2018 = vunpack.c.l.b16 %v290
        %v2019 = vunpack.c.h.b16 %v290
        %v2020 = vunpack.c.l.b16 %v291
        %v2021 = vunpack.c.h.b16 %v291
        %v2022 = vunpack.c.l.b16 %v292
        %v2023 = vunpack.c.h.b16 %v292
        %v2024 = vunpack.c.l.b16 %v293
        %v2025 = vunpack.c.h.b16 %v293
        %v2026 = vunpack.c.l.b16 %v294
        %v2027 = vunpack.c.h.b16 %v294
        %v2028 = vunpack.c.l.b16 %v295
        %v2029 = vunpack.c.h.b16 %v295
        %v2030 = vunpack.c.l.b16 %v296
        %v2031 = vunpack.c.h.b16 %v296
        %v2032 = vunpack.c.l.b16 %v297
        %v2033 = vunpack.c.h.b16 %v297
        %v2034 = vunpack.c.l.b16 %v298
        %v2035 = vunpack.c.h.b16 %v298
        %v2036 = vunpack.c.l.b16 %v299
        %v2037 = vunpack.c.h.b16 %v299
        %v2038 = vunpack.c.l.b16 %v300
        %v2039 = vunpack.c.h.b16 %v300
        %v2040 = vunpack.c.l.b16 %v301
        %v2041 = vunpack.c.h.b16 %v301
        %v2042 = vunpack.c.l.b16 %v302
        %v2043 = vunpack.c.h.b16 %v302
        %v2044 = vunpack.c.l.b16 %v303
        %v2045 = vunpack.c.h.b16 %v303
        %v2046 = vunpack.c.l.b16 %v304
        %v2047 = vunpack.c.h.b16 %v304
        %v2048 = vunpack.c.l.b16 %v305
        %v2049 = vunpack.c.h.b16 %v305
        %v2050 = vunpack.c.l.b16 %v306
        %v2051 = vunpack.c.h.b16 %v306
        %v2052 = vunpack.c.l.b16 %v307
        %v2053 = vunpack.c.h.b16 %v307
        %v2054 = vunpack.c.l.b16 %v308
        %v2055 = vunpack.c.h.b16 %v308
        %v2056 = vunpack.c.l.b16 %v309
        %v2057 = vunpack.c.h.b16 %v309
        %v2058 = vunpack.c.l.b16 %v310
        %v2059 = vunpack.c.h.b16 %v310
        %v2060 = vunpack.c.l.b16 %v311
        %v2061 = vunpack.c.h.b16 %v311
        %v2062 = vunpack.c.l.b16 %v312
        %v2063 = vunpack.c.h.b16 %v312
        %v2064 = vunpack.c.l.b16 %v313
        %v2065 = vunpack.c.h.b16 %v313
        %v2066 = vunpack.c.l.b16 %v314
        %v2067 = vunpack.c.h.b16 %v314
        %v2068 = vunpack.c.l.b16 %v315
        %v2069 = vunpack.c.h.b16 %v315
        %v2070 = vunpack.c.l.b16 %v316
        %v2071 = vunpack.c.h.b16 %v316
        %v2072 = vunpack.c.l.b16 %v317
        %v2073 = vunpack.c.h.b16 %v317
        %v2074 = vunpack.c.l.b16 %v318
        %v2075 = vunpack.c.h.b16 %v318
        %v2076 = vunpack.c.l.b16 %v319
        %v2077 = vunpack.c.h.b16 %v319
        %v2078 = vunpack.c.l.b16 %v320
        %v2079 = vunpack.c.h.b16 %v320
        %v2080 = vunpack.c.l.b16 %v321
        %v2081 = vunpack.c.h.b16 %v321
        %v2082 = vunpack.c.l.b16 %v322
        %v2083 = vunpack.c.h.b16 %v322
        %v2084 = vunpack.c.l.b16 %v323
        %v2085 = vunpack.c.h.b16 %v323
        %v2086 = vunpack.c.l.b16 %v324
        %v2087 = vunpack.c.h.b16 %v324
        %v2088 = vunpack.c.l.b16 %v325
        %v2089 = vunpack.c.h.b16 %v325
        %v2090 = vunpack.c.l.b16 %v326
        %v2091 = vunpack.c.h.b16 %v326
        %v2092 = vunpack.c.l.b16 %v327
        %v2093 = vunpack.c.h.b16 %v327
        %v2094 = vunpack.c.l.b16 %v328
        %v2095 = vunpack.c.h.b16 %v328
        %v2096 = vunpack.c.l.b16 %v329
        %v2097 = vunpack.c.h.b16 %v329
        %v2098 = vunpack.c.l.b16 %v330
        %v2099 = vunpack.c.h.b16 %v330
        %v2100 = vunpack.c.l.b16 %v331
        %v2101 = vunpack.c.h.b16 %v331
        %v2102 = vunpack.c.l.b16 %v332
        %v2103 = vunpack.c.h.b16 %v332
        %v2104 = vunpack.c.l.b16 %v333
        %v2105 = vunpack.c.h.b16 %v333
        %v2106 = vpack.c.b16 %v1948, %v1946
        %v2107 = vpack.c.b16 %v1949, %v1947
        %v2108 = vpack.c.b16 %v1952, %v1950
        %v2109 = vpack.c.b16 %v1953, %v1951
        %v2110 = vpack.c.b16 %v1956, %v1954
        %v2111 = vpack.c.b16 %v1957, %v1955
        %v2112 = vpack.c.b16 %v1960, %v1958
        %v2113 = vpack.c.b16 %v1961, %v1959
        %v2114 = vpack.c.b16 %v1964, %v1962
        %v2115 = vpack.c.b16 %v1965, %v1963
        %v2116 = vpack.c.b16 %v1968, %v1966
        %v2117 = vpack.c.b16 %v1969, %v1967
        %v2118 = vpack.c.b16 %v1972, %v1970
        %v2119 = vpack.c.b16 %v1973, %v1971
        %v2120 = vpack.c.b16 %v1976, %v1974
        %v2121 = vpack.c.b16 %v1977, %v1975
        %v2122 = vpack.c.b16 %v1980, %v1978
        %v2123 = vpack.c.b16 %v1981, %v1979
        %v2124 = vpack.c.b16 %v1984, %v1982
        %v2125 = vpack.c.b16 %v1985, %v1983
        %v2126 = vpack.c.b16 %v1988, %v1986
        %v2127 = vpack.c.b16 %v1989, %v1987
        %v2128 = vpack.c.b16 %v1992, %v1990
        %v2129 = vpack.c.b16 %v1993, %v1991
        %v2130 = vpack.c.b16 %v1996, %v1994
        %v2131 = vpack.c.b16 %v1997, %v1995
        %v2132 = vpack.c.b16 %v2000, %v1998
        %v2133 = vpack.c.b16 %v2001, %v1999
        %v2134 = vpack.c.b16 %v2004, %v2002
        %v2135 = vpack.c.b16 %v2005, %v2003
        %v2136 = vpack.c.b16 %v2008, %v2006
        %v2137 = vpack.c.b16 %v2009, %v2007
        %v2138 = vpack.c.b16 %v2012, %v2010
        %v2139 = vpack.c.b16 %v2013, %v2011
        %v2140 = vpack.c.b16 %v2016, %v2014
        %v2141 = vpack.c.b16 %v2017, %v2015
        %v2142 = vpack.c.b16 %v2020, %v2018
        %v2143 = vpack.c.b16 %v2021, %v2019
        %v2144 = vpack.c.b16 %v2024, %v2022
        %v2145 = vpack.c.b16 %v2025, %v2023
        %v2146 = vpack.c.b16 %v2028, %v2026
        %v2147 = vpack.c.b16 %v2029, %v2027
        %v2148 = vpack.c.b16 %v2032, %v2030
        %v2149 = vpack.c.b16 %v2033, %v2031
        %v2150 = vpack.c.b16 %v2036, %v2034
        %v2151 = vpack.c.b16 %v2037, %v2035
        %v2152 = vpack.c.b16 %v2040, %v2038
        %v2153 = vpack.c.b16 %v2041, %v2039
        %v2154 = vpack.c.b16 %v2044, %v2042
        %v2155 = vpack.c.b16 %v2045, %v2043
        %v2156 = vpack.c.b16 %v2048, %v2046
        %v2157 = vpack.c.b16 %v2049, %v2047
        %v2158 = vpack.c.b16 %v2052, %v2050
        %v2159 = vpack.c.b16 %v2053, %v2051
        %v2160 = vpack.c.b16 %v2056, %v2054
        %v2161 = vpack.c.b16 %v2057, %v2055
        %v2162 = vpack.c.b16 %v2060, %v2058
        %v2163 = vpack.c.b16 %v2061, %v2059
        %v2164 = vpack.c.b16 %v2064, %v2062
        %v2165 = vpack.c.b16 %v2065, %v2063
        %v2166 = vpack.c.b16 %v2068, %v2066
        %v2167 = vpack.c.b16 %v2069, %v2067
        %v2168 = vpack.c.b16 %v2072, %v2070
        %v2169 = vpack.c.b16 %v2073, %v2071
        %v2170 = vpack.c.b16 %v2076, %v2074
        %v2171 = vpack.c.b16 %v2077, %v2075
        %v2172 = vpack.c.b16 %v2080, %v2078
        %v2173 = vpack.c.b16 %v2081, %v2079
        %v2174 = vpack.c.b16 %v2084, %v2082
        %v2175 = vpack.c.b16 %v2085, %v2083
        %v2176 = vpack.c.b16 %v2088, %v2086
        %v2177 = vpack.c.b16 %v2089, %v2087
        %v2178 = vpack.c.b16 %v2092, %v2090
        %v2179 = vpack.c.b16 %v2093, %v2091
        %v2180 = vpack.c.b16 %v2096, %v2094
        %v2181 = vpack.c.b16 %v2097, %v2095
        %v2182 = vpack.c.b16 %v2100, %v2098
        %v2183 = vpack.c.b16 %v2101, %v2099
        %v2184 = vpack.c.b16 %v2104, %v2102
        %v2185 = vpack.c.b16 %v2105, %v2103
        %2266 = vmatpush.bf16.msra.mxu0 %v2120
        %2267 = vmatpush.bf16.msra.mxu0 %v2118
        %2268 = vmatpush.bf16.msra.mxu0 %v2116
        %2269 = vmatpush.bf16.msra.mxu0 %v2114
        %2270 = vmatpush.bf16.msra.mxu0 %v2112
        %2271 = vmatpush.bf16.msra.mxu0 %v2110
        %2272 = vmatpush.bf16.msra.mxu0 %v2108
        %2273 = vmatpush.bf16.msra.mxu0 %v2106
        %2274 = vmatmul.bf16.gmra.mxu0 %v1826
        %v2275 = vpop.f32.mrf.mxu0
        %v2276 = vadd.f32 0.0, %v2275
        %v2277 = vpop.f32.mrf.mxu0
        %v2278 = vadd.f32 0.0, %v2277
        %2279 = vmatmul.bf16.gmra.mxu0 %v1831
        %v2280 = vpop.f32.mrf.mxu0
        %v2281 = vadd.f32 0.0, %v2280
        %v2282 = vpop.f32.mrf.mxu0
        %v2283 = vadd.f32 0.0, %v2282
        %2284 = vmatmul.bf16.gmra.mxu0 %v1836
        %v2285 = vpop.f32.mrf.mxu0
        %v2286 = vadd.f32 0.0, %v2285
        %v2287 = vpop.f32.mrf.mxu0
        %v2288 = vadd.f32 0.0, %v2287
        %2289 = vmatmul.bf16.gmra.mxu0 %v1841
        %v2290 = vpop.f32.mrf.mxu0
        %v2291 = vadd.f32 0.0, %v2290
        %v2292 = vpop.f32.mrf.mxu0
        %v2293 = vadd.f32 0.0, %v2292
        %2294 = vmatmul.bf16.gmra.mxu0 %v1846
        %v2295 = vpop.f32.mrf.mxu0
        %v2296 = vadd.f32 0.0, %v2295
        %v2297 = vpop.f32.mrf.mxu0
        %v2298 = vadd.f32 0.0, %v2297
        %2299 = vmatmul.bf16.gmra.mxu0 %v1851
        %v2300 = vpop.f32.mrf.mxu0
        %v2301 = vadd.f32 0.0, %v2300
        %v2302 = vpop.f32.mrf.mxu0
        %v2303 = vadd.f32 0.0, %v2302
        %2304 = vmatmul.bf16.gmra.mxu0 %v1856
        %v2305 = vpop.f32.mrf.mxu0
        %v2306 = vadd.f32 0.0, %v2305
        %v2307 = vpop.f32.mrf.mxu0
        %v2308 = vadd.f32 0.0, %v2307
        %2309 = vmatmul.bf16.gmra.mxu0 %v1861
        %v2310 = vpop.f32.mrf.mxu0
        %v2311 = vadd.f32 0.0, %v2310
        %v2312 = vpop.f32.mrf.mxu0
        %v2313 = vadd.f32 0.0, %v2312
        %2314 = vdwg.mxu0
        %2315 = vmatpush.bf16.msra.mxu0 %v2136
        %2316 = vmatpush.bf16.msra.mxu0 %v2134
        %2317 = vmatpush.bf16.msra.mxu0 %v2132
        %2318 = vmatpush.bf16.msra.mxu0 %v2130
        %2319 = vmatpush.bf16.msra.mxu0 %v2128
        %2320 = vmatpush.bf16.msra.mxu0 %v2126
        %2321 = vmatpush.bf16.msra.mxu0 %v2124
        %2322 = vmatpush.bf16.msra.mxu0 %v2122
        %2323 = vmatmul.bf16.gmra.mxu0 %v1827
        %v2324 = vpop.f32.mrf.mxu0
        %v2325 = vadd.f32 %v2276, %v2324
        %v2326 = vpop.f32.mrf.mxu0
        %v2327 = vadd.f32 %v2278, %v2326
        %2328 = vmatmul.bf16.gmra.mxu0 %v1832
        %v2329 = vpop.f32.mrf.mxu0
        %v2330 = vadd.f32 %v2281, %v2329
        %v2331 = vpop.f32.mrf.mxu0
        %v2332 = vadd.f32 %v2283, %v2331
        %2333 = vmatmul.bf16.gmra.mxu0 %v1837
        %v2334 = vpop.f32.mrf.mxu0
        %v2335 = vadd.f32 %v2286, %v2334
        %v2336 = vpop.f32.mrf.mxu0
        %v2337 = vadd.f32 %v2288, %v2336
        %2338 = vmatmul.bf16.gmra.mxu0 %v1842
        %v2339 = vpop.f32.mrf.mxu0
        %v2340 = vadd.f32 %v2291, %v2339
        %v2341 = vpop.f32.mrf.mxu0
        %v2342 = vadd.f32 %v2293, %v2341
        %2343 = vmatmul.bf16.gmra.mxu0 %v1847
        %v2344 = vpop.f32.mrf.mxu0
        %v2345 = vadd.f32 %v2296, %v2344
        %v2346 = vpop.f32.mrf.mxu0
        %v2347 = vadd.f32 %v2298, %v2346
        %2348 = vmatmul.bf16.gmra.mxu0 %v1852
        %v2349 = vpop.f32.mrf.mxu0
        %v2350 = vadd.f32 %v2301, %v2349
        %v2351 = vpop.f32.mrf.mxu0
        %v2352 = vadd.f32 %v2303, %v2351
        %2353 = vmatmul.bf16.gmra.mxu0 %v1857
        %v2354 = vpop.f32.mrf.mxu0
        %v2355 = vadd.f32 %v2306, %v2354
        %v2356 = vpop.f32.mrf.mxu0
        %v2357 = vadd.f32 %v2308, %v2356
        %2358 = vmatmul.bf16.gmra.mxu0 %v1862
        %v2359 = vpop.f32.mrf.mxu0
        %v2360 = vadd.f32 %v2311, %v2359
        %v2361 = vpop.f32.mrf.mxu0
        %v2362 = vadd.f32 %v2313, %v2361
        %2363 = vdwg.mxu0
        %2364 = vmatpush.bf16.msra.mxu0 %v2152
        %2365 = vmatpush.bf16.msra.mxu0 %v2150
        %2366 = vmatpush.bf16.msra.mxu0 %v2148
        %2367 = vmatpush.bf16.msra.mxu0 %v2146
        %2368 = vmatpush.bf16.msra.mxu0 %v2144
        %2369 = vmatpush.bf16.msra.mxu0 %v2142
        %2370 = vmatpush.bf16.msra.mxu0 %v2140
        %2371 = vmatpush.bf16.msra.mxu0 %v2138
        %2372 = vmatmul.bf16.gmra.mxu0 %v1828
        %v2373 = vpop.f32.mrf.mxu0
        %v2374 = vadd.f32 %v2325, %v2373
        %v2375 = vpop.f32.mrf.mxu0
        %v2376 = vadd.f32 %v2327, %v2375
        %2377 = vmatmul.bf16.gmra.mxu0 %v1833
        %v2378 = vpop.f32.mrf.mxu0
        %v2379 = vadd.f32 %v2330, %v2378
        %v2380 = vpop.f32.mrf.mxu0
        %v2381 = vadd.f32 %v2332, %v2380
        %2382 = vmatmul.bf16.gmra.mxu0 %v1838
        %v2383 = vpop.f32.mrf.mxu0
        %v2384 = vadd.f32 %v2335, %v2383
        %v2385 = vpop.f32.mrf.mxu0
        %v2386 = vadd.f32 %v2337, %v2385
        %2387 = vmatmul.bf16.gmra.mxu0 %v1843
        %v2388 = vpop.f32.mrf.mxu0
        %v2389 = vadd.f32 %v2340, %v2388
        %v2390 = vpop.f32.mrf.mxu0
        %v2391 = vadd.f32 %v2342, %v2390
        %2392 = vmatmul.bf16.gmra.mxu0 %v1848
        %v2393 = vpop.f32.mrf.mxu0
        %v2394 = vadd.f32 %v2345, %v2393
        %v2395 = vpop.f32.mrf.mxu0
        %v2396 = vadd.f32 %v2347, %v2395
        %2397 = vmatmul.bf16.gmra.mxu0 %v1853
        %v2398 = vpop.f32.mrf.mxu0
        %v2399 = vadd.f32 %v2350, %v2398
        %v2400 = vpop.f32.mrf.mxu0
        %v2401 = vadd.f32 %v2352, %v2400
        %2402 = vmatmul.bf16.gmra.mxu0 %v1858
        %v2403 = vpop.f32.mrf.mxu0
        %v2404 = vadd.f32 %v2355, %v2403
        %v2405 = vpop.f32.mrf.mxu0
        %v2406 = vadd.f32 %v2357, %v2405
        %2407 = vmatmul.bf16.gmra.mxu0 %v1863
        %v2408 = vpop.f32.mrf.mxu0
        %v2409 = vadd.f32 %v2360, %v2408
        %v2410 = vpop.f32.mrf.mxu0
        %v2411 = vadd.f32 %v2362, %v2410
        %2412 = vdwg.mxu0
        %2413 = vmatpush.bf16.msra.mxu0 %v2168
        %2414 = vmatpush.bf16.msra.mxu0 %v2166
        %2415 = vmatpush.bf16.msra.mxu0 %v2164
        %2416 = vmatpush.bf16.msra.mxu0 %v2162
        %2417 = vmatpush.bf16.msra.mxu0 %v2160
        %2418 = vmatpush.bf16.msra.mxu0 %v2158
        %2419 = vmatpush.bf16.msra.mxu0 %v2156
        %2420 = vmatpush.bf16.msra.mxu0 %v2154
        %2421 = vmatmul.bf16.gmra.mxu0 %v1829
        %v2422 = vpop.f32.mrf.mxu0
        %v2423 = vadd.f32 %v2374, %v2422
        %v2424 = vpop.f32.mrf.mxu0
        %v2425 = vadd.f32 %v2376, %v2424
        %2426 = vmatmul.bf16.gmra.mxu0 %v1834
        %v2427 = vpop.f32.mrf.mxu0
        %v2428 = vadd.f32 %v2379, %v2427
        %v2429 = vpop.f32.mrf.mxu0
        %v2430 = vadd.f32 %v2381, %v2429
        %2431 = vmatmul.bf16.gmra.mxu0 %v1839
        %v2432 = vpop.f32.mrf.mxu0
        %v2433 = vadd.f32 %v2384, %v2432
        %v2434 = vpop.f32.mrf.mxu0
        %v2435 = vadd.f32 %v2386, %v2434
        %2436 = vmatmul.bf16.gmra.mxu0 %v1844
        %v2437 = vpop.f32.mrf.mxu0
        %v2438 = vadd.f32 %v2389, %v2437
        %v2439 = vpop.f32.mrf.mxu0
        %v2440 = vadd.f32 %v2391, %v2439
        %2441 = vmatmul.bf16.gmra.mxu0 %v1849
        %v2442 = vpop.f32.mrf.mxu0
        %v2443 = vadd.f32 %v2394, %v2442
        %v2444 = vpop.f32.mrf.mxu0
        %v2445 = vadd.f32 %v2396, %v2444
        %2446 = vmatmul.bf16.gmra.mxu0 %v1854
        %v2447 = vpop.f32.mrf.mxu0
        %v2448 = vadd.f32 %v2399, %v2447
        %v2449 = vpop.f32.mrf.mxu0
        %v2450 = vadd.f32 %v2401, %v2449
        %2451 = vmatmul.bf16.gmra.mxu0 %v1859
        %v2452 = vpop.f32.mrf.mxu0
        %v2453 = vadd.f32 %v2404, %v2452
        %v2454 = vpop.f32.mrf.mxu0
        %v2455 = vadd.f32 %v2406, %v2454
        %2456 = vmatmul.bf16.gmra.mxu0 %v1864
        %v2457 = vpop.f32.mrf.mxu0
        %v2458 = vadd.f32 %v2409, %v2457
        %v2459 = vpop.f32.mrf.mxu0
        %v2460 = vadd.f32 %v2411, %v2459
        %2461 = vdwg.mxu0
        %2462 = vmatpush.bf16.msra.mxu0 %v2184
        %2463 = vmatpush.bf16.msra.mxu0 %v2182
        %2464 = vmatpush.bf16.msra.mxu0 %v2180
        %2465 = vmatpush.bf16.msra.mxu0 %v2178
        %2466 = vmatpush.bf16.msra.mxu0 %v2176
        %2467 = vmatpush.bf16.msra.mxu0 %v2174
        %2468 = vmatpush.bf16.msra.mxu0 %v2172
        %2469 = vmatpush.bf16.msra.mxu0 %v2170
        %2470 = vmatmul.bf16.gmra.mxu0 %v1830
        %v2471 = vpop.f32.mrf.mxu0
        %v2472 = vadd.f32 %v2423, %v2471
        %v2473 = vpop.f32.mrf.mxu0
        %v2474 = vadd.f32 %v2425, %v2473
        %2475 = vmatmul.bf16.gmra.mxu0 %v1835
        %v2476 = vpop.f32.mrf.mxu0
        %v2477 = vadd.f32 %v2428, %v2476
        %v2478 = vpop.f32.mrf.mxu0
        %v2479 = vadd.f32 %v2430, %v2478
        %2480 = vmatmul.bf16.gmra.mxu0 %v1840
        %v2481 = vpop.f32.mrf.mxu0
        %v2482 = vadd.f32 %v2433, %v2481
        %v2483 = vpop.f32.mrf.mxu0
        %v2484 = vadd.f32 %v2435, %v2483
        %2485 = vmatmul.bf16.gmra.mxu0 %v1845
        %v2486 = vpop.f32.mrf.mxu0
        %v2487 = vadd.f32 %v2438, %v2486
        %v2488 = vpop.f32.mrf.mxu0
        %v2489 = vadd.f32 %v2440, %v2488
        %2490 = vmatmul.bf16.gmra.mxu0 %v1850
        %v2491 = vpop.f32.mrf.mxu0
        %v2492 = vadd.f32 %v2443, %v2491
        %v2493 = vpop.f32.mrf.mxu0
        %v2494 = vadd.f32 %v2445, %v2493
        %2495 = vmatmul.bf16.gmra.mxu0 %v1855
        %v2496 = vpop.f32.mrf.mxu0
        %v2497 = vadd.f32 %v2448, %v2496
        %v2498 = vpop.f32.mrf.mxu0
        %v2499 = vadd.f32 %v2450, %v2498
        %2500 = vmatmul.bf16.gmra.mxu0 %v1860
        %v2501 = vpop.f32.mrf.mxu0
        %v2502 = vadd.f32 %v2453, %v2501
        %v2503 = vpop.f32.mrf.mxu0
        %v2504 = vadd.f32 %v2455, %v2503
        %2505 = vmatmul.bf16.gmra.mxu0 %v1865
        %v2506 = vpop.f32.mrf.mxu0
        %v2507 = vadd.f32 %v2458, %v2506
        %v2508 = vpop.f32.mrf.mxu0
        %v2509 = vadd.f32 %v2460, %v2508
        %2510 = vdwg.mxu0
        %2511 = vmatpush.bf16.msra.mxu0 %v2121
        %2512 = vmatpush.bf16.msra.mxu0 %v2119
        %2513 = vmatpush.bf16.msra.mxu0 %v2117
        %2514 = vmatpush.bf16.msra.mxu0 %v2115
        %2515 = vmatpush.bf16.msra.mxu0 %v2113
        %2516 = vmatpush.bf16.msra.mxu0 %v2111
        %2517 = vmatpush.bf16.msra.mxu0 %v2109
        %2518 = vmatpush.bf16.msra.mxu0 %v2107
        %2519 = vmatmul.bf16.gmra.mxu0 %v1826
        %v2520 = vpop.f32.mrf.mxu0
        %v2521 = vadd.f32 0.0, %v2520
        %v2522 = vpop.f32.mrf.mxu0
        %v2523 = vadd.f32 0.0, %v2522
        %2524 = vmatmul.bf16.gmra.mxu0 %v1831
        %v2525 = vpop.f32.mrf.mxu0
        %v2526 = vadd.f32 0.0, %v2525
        %v2527 = vpop.f32.mrf.mxu0
        %v2528 = vadd.f32 0.0, %v2527
        %2529 = vmatmul.bf16.gmra.mxu0 %v1836
        %v2530 = vpop.f32.mrf.mxu0
        %v2531 = vadd.f32 0.0, %v2530
        %v2532 = vpop.f32.mrf.mxu0
        %v2533 = vadd.f32 0.0, %v2532
        %2534 = vmatmul.bf16.gmra.mxu0 %v1841
        %v2535 = vpop.f32.mrf.mxu0
        %v2536 = vadd.f32 0.0, %v2535
        %v2537 = vpop.f32.mrf.mxu0
        %v2538 = vadd.f32 0.0, %v2537
        %2539 = vmatmul.bf16.gmra.mxu0 %v1846
        %v2540 = vpop.f32.mrf.mxu0
        %v2541 = vadd.f32 0.0, %v2540
        %v2542 = vpop.f32.mrf.mxu0
        %v2543 = vadd.f32 0.0, %v2542
        %2544 = vmatmul.bf16.gmra.mxu0 %v1851
        %v2545 = vpop.f32.mrf.mxu0
        %v2546 = vadd.f32 0.0, %v2545
        %v2547 = vpop.f32.mrf.mxu0
        %v2548 = vadd.f32 0.0, %v2547
        %2549 = vmatmul.bf16.gmra.mxu0 %v1856
        %v2550 = vpop.f32.mrf.mxu0
        %v2551 = vadd.f32 0.0, %v2550
        %v2552 = vpop.f32.mrf.mxu0
        %v2553 = vadd.f32 0.0, %v2552
        %2554 = vmatmul.bf16.gmra.mxu0 %v1861
        %v2555 = vpop.f32.mrf.mxu0
        %v2556 = vadd.f32 0.0, %v2555
        %v2557 = vpop.f32.mrf.mxu0
        %v2558 = vadd.f32 0.0, %v2557
        %2559 = vdwg.mxu0
        %2560 = vmatpush.bf16.msra.mxu0 %v2137
        %2561 = vmatpush.bf16.msra.mxu0 %v2135
        %2562 = vmatpush.bf16.msra.mxu0 %v2133
        %2563 = vmatpush.bf16.msra.mxu0 %v2131
        %2564 = vmatpush.bf16.msra.mxu0 %v2129
        %2565 = vmatpush.bf16.msra.mxu0 %v2127
        %2566 = vmatpush.bf16.msra.mxu0 %v2125
        %2567 = vmatpush.bf16.msra.mxu0 %v2123
        %2568 = vmatmul.bf16.gmra.mxu0 %v1827
        %v2569 = vpop.f32.mrf.mxu0
        %v2570 = vadd.f32 %v2521, %v2569
        %v2571 = vpop.f32.mrf.mxu0
        %v2572 = vadd.f32 %v2523, %v2571
        %2573 = vmatmul.bf16.gmra.mxu0 %v1832
        %v2574 = vpop.f32.mrf.mxu0
        %v2575 = vadd.f32 %v2526, %v2574
        %v2576 = vpop.f32.mrf.mxu0
        %v2577 = vadd.f32 %v2528, %v2576
        %2578 = vmatmul.bf16.gmra.mxu0 %v1837
        %v2579 = vpop.f32.mrf.mxu0
        %v2580 = vadd.f32 %v2531, %v2579
        %v2581 = vpop.f32.mrf.mxu0
        %v2582 = vadd.f32 %v2533, %v2581
        %2583 = vmatmul.bf16.gmra.mxu0 %v1842
        %v2584 = vpop.f32.mrf.mxu0
        %v2585 = vadd.f32 %v2536, %v2584
        %v2586 = vpop.f32.mrf.mxu0
        %v2587 = vadd.f32 %v2538, %v2586
        %2588 = vmatmul.bf16.gmra.mxu0 %v1847
        %v2589 = vpop.f32.mrf.mxu0
        %v2590 = vadd.f32 %v2541, %v2589
        %v2591 = vpop.f32.mrf.mxu0
        %v2592 = vadd.f32 %v2543, %v2591
        %2593 = vmatmul.bf16.gmra.mxu0 %v1852
        %v2594 = vpop.f32.mrf.mxu0
        %v2595 = vadd.f32 %v2546, %v2594
        %v2596 = vpop.f32.mrf.mxu0
        %v2597 = vadd.f32 %v2548, %v2596
        %2598 = vmatmul.bf16.gmra.mxu0 %v1857
        %v2599 = vpop.f32.mrf.mxu0
        %v2600 = vadd.f32 %v2551, %v2599
        %v2601 = vpop.f32.mrf.mxu0
        %v2602 = vadd.f32 %v2553, %v2601
        %2603 = vmatmul.bf16.gmra.mxu0 %v1862
        %v2604 = vpop.f32.mrf.mxu0
        %v2605 = vadd.f32 %v2556, %v2604
        %v2606 = vpop.f32.mrf.mxu0
        %v2607 = vadd.f32 %v2558, %v2606
        %2608 = vdwg.mxu0
        %2609 = vmatpush.bf16.msra.mxu0 %v2153
        %2610 = vmatpush.bf16.msra.mxu0 %v2151
        %2611 = vmatpush.bf16.msra.mxu0 %v2149
        %2612 = vmatpush.bf16.msra.mxu0 %v2147
        %2613 = vmatpush.bf16.msra.mxu0 %v2145
        %2614 = vmatpush.bf16.msra.mxu0 %v2143
        %2615 = vmatpush.bf16.msra.mxu0 %v2141
        %2616 = vmatpush.bf16.msra.mxu0 %v2139
        %2617 = vmatmul.bf16.gmra.mxu0 %v1828
        %v2618 = vpop.f32.mrf.mxu0
        %v2619 = vadd.f32 %v2570, %v2618
        %v2620 = vpop.f32.mrf.mxu0
        %v2621 = vadd.f32 %v2572, %v2620
        %2622 = vmatmul.bf16.gmra.mxu0 %v1833
        %v2623 = vpop.f32.mrf.mxu0
        %v2624 = vadd.f32 %v2575, %v2623
        %v2625 = vpop.f32.mrf.mxu0
        %v2626 = vadd.f32 %v2577, %v2625
        %2627 = vmatmul.bf16.gmra.mxu0 %v1838
        %v2628 = vpop.f32.mrf.mxu0
        %v2629 = vadd.f32 %v2580, %v2628
        %v2630 = vpop.f32.mrf.mxu0
        %v2631 = vadd.f32 %v2582, %v2630
        %2632 = vmatmul.bf16.gmra.mxu0 %v1843
        %v2633 = vpop.f32.mrf.mxu0
        %v2634 = vadd.f32 %v2585, %v2633
        %v2635 = vpop.f32.mrf.mxu0
        %v2636 = vadd.f32 %v2587, %v2635
        %2637 = vmatmul.bf16.gmra.mxu0 %v1848
        %v2638 = vpop.f32.mrf.mxu0
        %v2639 = vadd.f32 %v2590, %v2638
        %v2640 = vpop.f32.mrf.mxu0
        %v2641 = vadd.f32 %v2592, %v2640
        %2642 = vmatmul.bf16.gmra.mxu0 %v1853
        %v2643 = vpop.f32.mrf.mxu0
        %v2644 = vadd.f32 %v2595, %v2643
        %v2645 = vpop.f32.mrf.mxu0
        %v2646 = vadd.f32 %v2597, %v2645
        %2647 = vmatmul.bf16.gmra.mxu0 %v1858
        %v2648 = vpop.f32.mrf.mxu0
        %v2649 = vadd.f32 %v2600, %v2648
        %v2650 = vpop.f32.mrf.mxu0
        %v2651 = vadd.f32 %v2602, %v2650
        %2652 = vmatmul.bf16.gmra.mxu0 %v1863
        %v2653 = vpop.f32.mrf.mxu0
        %v2654 = vadd.f32 %v2605, %v2653
        %v2655 = vpop.f32.mrf.mxu0
        %v2656 = vadd.f32 %v2607, %v2655
        %2657 = vdwg.mxu0
        %2658 = vmatpush.bf16.msra.mxu0 %v2169
        %2659 = vmatpush.bf16.msra.mxu0 %v2167
        %2660 = vmatpush.bf16.msra.mxu0 %v2165
        %2661 = vmatpush.bf16.msra.mxu0 %v2163
        %2662 = vmatpush.bf16.msra.mxu0 %v2161
        %2663 = vmatpush.bf16.msra.mxu0 %v2159
        %2664 = vmatpush.bf16.msra.mxu0 %v2157
        %2665 = vmatpush.bf16.msra.mxu0 %v2155
        %2666 = vmatmul.bf16.gmra.mxu0 %v1829
        %v2667 = vpop.f32.mrf.mxu0
        %v2668 = vadd.f32 %v2619, %v2667
        %v2669 = vpop.f32.mrf.mxu0
        %v2670 = vadd.f32 %v2621, %v2669
        %2671 = vmatmul.bf16.gmra.mxu0 %v1834
        %v2672 = vpop.f32.mrf.mxu0
        %v2673 = vadd.f32 %v2624, %v2672
        %v2674 = vpop.f32.mrf.mxu0
        %v2675 = vadd.f32 %v2626, %v2674
        %2676 = vmatmul.bf16.gmra.mxu0 %v1839
        %v2677 = vpop.f32.mrf.mxu0
        %v2678 = vadd.f32 %v2629, %v2677
        %v2679 = vpop.f32.mrf.mxu0
        %v2680 = vadd.f32 %v2631, %v2679
        %2681 = vmatmul.bf16.gmra.mxu0 %v1844
        %v2682 = vpop.f32.mrf.mxu0
        %v2683 = vadd.f32 %v2634, %v2682
        %v2684 = vpop.f32.mrf.mxu0
        %v2685 = vadd.f32 %v2636, %v2684
        %2686 = vmatmul.bf16.gmra.mxu0 %v1849
        %v2687 = vpop.f32.mrf.mxu0
        %v2688 = vadd.f32 %v2639, %v2687
        %v2689 = vpop.f32.mrf.mxu0
        %v2690 = vadd.f32 %v2641, %v2689
        %2691 = vmatmul.bf16.gmra.mxu0 %v1854
        %v2692 = vpop.f32.mrf.mxu0
        %v2693 = vadd.f32 %v2644, %v2692
        %v2694 = vpop.f32.mrf.mxu0
        %v2695 = vadd.f32 %v2646, %v2694
        %2696 = vmatmul.bf16.gmra.mxu0 %v1859
        %v2697 = vpop.f32.mrf.mxu0
        %v2698 = vadd.f32 %v2649, %v2697
        %v2699 = vpop.f32.mrf.mxu0
        %v2700 = vadd.f32 %v2651, %v2699
        %2701 = vmatmul.bf16.gmra.mxu0 %v1864
        %v2702 = vpop.f32.mrf.mxu0
        %v2703 = vadd.f32 %v2654, %v2702
        %v2704 = vpop.f32.mrf.mxu0
        %v2705 = vadd.f32 %v2656, %v2704
        %2706 = vdwg.mxu0
        %2707 = vmatpush.bf16.msra.mxu0 %v2185
        %2708 = vmatpush.bf16.msra.mxu0 %v2183
        %2709 = vmatpush.bf16.msra.mxu0 %v2181
        %2710 = vmatpush.bf16.msra.mxu0 %v2179
        %2711 = vmatpush.bf16.msra.mxu0 %v2177
        %2712 = vmatpush.bf16.msra.mxu0 %v2175
        %2713 = vmatpush.bf16.msra.mxu0 %v2173
        %2714 = vmatpush.bf16.msra.mxu0 %v2171
        %2715 = vmatmul.bf16.gmra.mxu0 %v1830
        %v2716 = vpop.f32.mrf.mxu0
        %v2717 = vadd.f32 %v2668, %v2716
        %v2718 = vpop.f32.mrf.mxu0
        %v2719 = vadd.f32 %v2670, %v2718
        %2720 = vmatmul.bf16.gmra.mxu0 %v1835
        %v2721 = vpop.f32.mrf.mxu0
        %v2722 = vadd.f32 %v2673, %v2721
        %v2723 = vpop.f32.mrf.mxu0
        %v2724 = vadd.f32 %v2675, %v2723
        %2725 = vmatmul.bf16.gmra.mxu0 %v1840
        %v2726 = vpop.f32.mrf.mxu0
        %v2727 = vadd.f32 %v2678, %v2726
        %v2728 = vpop.f32.mrf.mxu0
        %v2729 = vadd.f32 %v2680, %v2728
        %2730 = vmatmul.bf16.gmra.mxu0 %v1845
        %v2731 = vpop.f32.mrf.mxu0
        %v2732 = vadd.f32 %v2683, %v2731
        %v2733 = vpop.f32.mrf.mxu0
        %v2734 = vadd.f32 %v2685, %v2733
        %2735 = vmatmul.bf16.gmra.mxu0 %v1850
        %v2736 = vpop.f32.mrf.mxu0
        %v2737 = vadd.f32 %v2688, %v2736
        %v2738 = vpop.f32.mrf.mxu0
        %v2739 = vadd.f32 %v2690, %v2738
        %2740 = vmatmul.bf16.gmra.mxu0 %v1855
        %v2741 = vpop.f32.mrf.mxu0
        %v2742 = vadd.f32 %v2693, %v2741
        %v2743 = vpop.f32.mrf.mxu0
        %v2744 = vadd.f32 %v2695, %v2743
        %2745 = vmatmul.bf16.gmra.mxu0 %v1860
        %v2746 = vpop.f32.mrf.mxu0
        %v2747 = vadd.f32 %v2698, %v2746
        %v2748 = vpop.f32.mrf.mxu0
        %v2749 = vadd.f32 %v2700, %v2748
        %2750 = vmatmul.bf16.gmra.mxu0 %v1865
        %v2751 = vpop.f32.mrf.mxu0
        %v2752 = vadd.f32 %v2703, %v2751
        %v2753 = vpop.f32.mrf.mxu0
        %v2754 = vadd.f32 %v2705, %v2753
        %2755 = vdwg.mxu0
        %v2756 = vmax.f32 %v2472, %v2717
        %v2757 = vmax.f32 %v2474, %v2719
        %v2758 = vmax.f32 %v2477, %v2722
        %v2759 = vmax.f32 %v2479, %v2724
        %v2760 = vmax.f32 %v2482, %v2727
        %v2761 = vmax.f32 %v2484, %v2729
        %v2762 = vmax.f32 %v2487, %v2732
        %v2763 = vmax.f32 %v2489, %v2734
        %v2764 = vmax.f32 %v2492, %v2737
        %v2765 = vmax.f32 %v2494, %v2739
        %v2766 = vmax.f32 %v2497, %v2742
        %v2767 = vmax.f32 %v2499, %v2744
        %v2768 = vmax.f32 %v2502, %v2747
        %v2769 = vmax.f32 %v2504, %v2749
        %v2770 = vmax.f32 %v2507, %v2752
        %v2771 = vmax.f32 %v2509, %v2754
        %v2772 = vperm.slane %v457, 0
        %v2773 = vadd.f32 %v2756, %v2772
        %v2774 = vadd.f32 %v2757, %v2772
        %v2775 = vadd.f32 %v2758, %v2772
        %v2776 = vadd.f32 %v2759, %v2772
        %v2777 = vadd.f32 %v2760, %v2772
        %v2778 = vadd.f32 %v2761, %v2772
        %v2779 = vadd.f32 %v2762, %v2772
        %v2780 = vadd.f32 %v2763, %v2772
        %v2781 = vadd.f32 %v2764, %v2772
        %v2782 = vadd.f32 %v2765, %v2772
        %v2783 = vadd.f32 %v2766, %v2772
        %v2784 = vadd.f32 %v2767, %v2772
        %v2785 = vadd.f32 %v2768, %v2772
        %v2786 = vadd.f32 %v2769, %v2772
        %v2787 = vadd.f32 %v2770, %v2772
        %v2788 = vadd.f32 %v2771, %v2772
        %v2789 = vmax.f32 %v2773, 0.0
        %v2790 = vmax.f32 %v2774, 0.0
        %v2791 = vmax.f32 %v2775, 0.0
        %v2792 = vmax.f32 %v2776, 0.0
        %v2793 = vmax.f32 %v2777, 0.0
        %v2794 = vmax.f32 %v2778, 0.0
        %v2795 = vmax.f32 %v2779, 0.0
        %v2796 = vmax.f32 %v2780, 0.0
        %v2797 = vmax.f32 %v2781, 0.0
        %v2798 = vmax.f32 %v2782, 0.0
        %v2799 = vmax.f32 %v2783, 0.0
        %v2800 = vmax.f32 %v2784, 0.0
        %v2801 = vmax.f32 %v2785, 0.0
        %v2802 = vmax.f32 %v2786, 0.0
        %v2803 = vmax.f32 %v2787, 0.0
        %v2804 = vmax.f32 %v2788, 0.0
        %v2805 = vpack.c.bf16 %v2790, %v2789
        %v2806 = vpack.c.bf16 %v2792, %v2791
        %v2807 = vpack.c.bf16 %v2794, %v2793
        %v2808 = vpack.c.bf16 %v2796, %v2795
        %v2809 = vpack.c.bf16 %v2798, %v2797
        %v2810 = vpack.c.bf16 %v2800, %v2799
        %v2811 = vpack.c.bf16 %v2802, %v2801
        %v2812 = vpack.c.bf16 %v2804, %v2803
        %v2823 = vunpack.c.l.b16 %v334
        %v2824 = vunpack.c.l.b16 %v335
        %v2825 = vunpack.c.l.b16 %v336
        %v2826 = vunpack.c.l.b16 %v337
        %v2827 = vunpack.c.l.b16 %v338
        %v2828 = vunpack.c.l.b16 %v339
        %v2829 = vunpack.c.l.b16 %v340
        %v2830 = vunpack.c.l.b16 %v341
        %v2831 = vunpack.c.l.b16 %v342
        %v2832 = vunpack.c.l.b16 %v343
        %v2833 = vpack.c.b16 %v2824, %v2823
        %v2834 = vpack.c.b16 %v2826, %v2825
        %v2835 = vpack.c.b16 %v2828, %v2827
        %v2836 = vpack.c.b16 %v2830, %v2829
        %v2837 = vpack.c.b16 %v2832, %v2831
        %2843 = vmatpush.bf16.msra.mxu0 %v2812
        %2844 = vmatpush.bf16.msra.mxu0 %v2811
        %2845 = vmatpush.bf16.msra.mxu0 %v2810
        %2846 = vmatpush.bf16.msra.mxu0 %v2809
        %2847 = vmatpush.bf16.msra.mxu0 %v2808
        %2848 = vmatpush.bf16.msra.mxu0 %v2807
        %2849 = vmatpush.bf16.msra.mxu0 %v2806
        %2850 = vmatpush.bf16.msra.mxu0 %v2805
        %2851 = vmatmul.bf16.gmra.mxu0 %v2833
        %v2852 = vpop.f32.mrf.mxu0
        %v2853 = vadd.f32 0.0, %v2852
        %v2854 = vpop.f32.mrf.mxu0
        %v2855 = vadd.f32 0.0, %v2854
        %2856 = vmatmul.bf16.gmra.mxu0 %v2834
        %v2857 = vpop.f32.mrf.mxu0
        %v2858 = vadd.f32 0.0, %v2857
        %v2859 = vpop.f32.mrf.mxu0
        %v2860 = vadd.f32 0.0, %v2859
        %2861 = vmatmul.bf16.gmra.mxu0 %v2835
        %v2862 = vpop.f32.mrf.mxu0
        %v2863 = vadd.f32 0.0, %v2862
        %v2864 = vpop.f32.mrf.mxu0
        %v2865 = vadd.f32 0.0, %v2864
        %2866 = vmatmul.bf16.gmra.mxu0 %v2836
        %v2867 = vpop.f32.mrf.mxu0
        %v2868 = vadd.f32 0.0, %v2867
        %v2869 = vpop.f32.mrf.mxu0
        %v2870 = vadd.f32 0.0, %v2869
        %2871 = vmatmul.bf16.gmra.mxu0 %v2837
        %v2872 = vpop.f32.mrf.mxu0
        %v2873 = vadd.f32 0.0, %v2872
        %v2874 = vpop.f32.mrf.mxu0
        %v2875 = vadd.f32 0.0, %v2874
        %2876 = vdwg.mxu0
        %v2877 = vmax.f32 %v2853, %v2865
        %v2878 = vmax.f32 %v2855, %v2868
        %v2879 = vmax.f32 %v2858, %v2870
        %v2880 = vmax.f32 %v2860, %v2873
        %v2881 = vmax.f32 %v2863, %v2875
        %v2882 = vpack.c.bf16 %v2877, %v2877
        %v2883 = vpack.c.bf16 %v2878, %v2878
        %v2884 = vpack.c.bf16 %v2879, %v2879
        %v2885 = vpack.c.bf16 %v2880, %v2880
        %v2886 = vpack.c.bf16 %v2881, %v2881
        %v2887 = vperm.slane %v458, 0
        %v2968 = vunpack.c.l.b16 %v344
        %v2969 = vunpack.c.l.b16 %v345
        %v2970 = vunpack.c.l.b16 %v346
        %v2971 = vunpack.c.l.b16 %v347
        %v2972 = vunpack.c.l.b16 %v348
        %v2973 = vunpack.c.l.b16 %v349
        %v2974 = vunpack.c.l.b16 %v350
        %v2975 = vunpack.c.l.b16 %v351
        %v2976 = vunpack.c.l.b16 %v352
        %v2977 = vunpack.c.l.b16 %v353
        %v2978 = vunpack.c.l.b16 %v354
        %v2979 = vunpack.c.l.b16 %v355
        %v2980 = vunpack.c.l.b16 %v356
        %v2981 = vunpack.c.l.b16 %v357
        %v2982 = vunpack.c.l.b16 %v358
        %v2983 = vunpack.c.l.b16 %v359
        %v2984 = vunpack.c.l.b16 %v360
        %v2985 = vunpack.c.l.b16 %v361
        %v2986 = vunpack.c.l.b16 %v362
        %v2987 = vunpack.c.l.b16 %v363
        %v2988 = vunpack.c.l.b16 %v364
        %v2989 = vunpack.c.l.b16 %v365
        %v2990 = vunpack.c.l.b16 %v366
        %v2991 = vunpack.c.l.b16 %v367
        %v2992 = vunpack.c.l.b16 %v368
        %v2993 = vunpack.c.l.b16 %v369
        %v2994 = vunpack.c.l.b16 %v370
        %v2995 = vunpack.c.l.b16 %v371
        %v2996 = vunpack.c.l.b16 %v372
        %v2997 = vunpack.c.l.b16 %v373
        %v2998 = vunpack.c.l.b16 %v374
        %v2999 = vunpack.c.l.b16 %v375
        %v3000 = vunpack.c.l.b16 %v376
        %v3001 = vunpack.c.l.b16 %v377
        %v3002 = vunpack.c.l.b16 %v378
        %v3003 = vunpack.c.l.b16 %v379
        %v3004 = vunpack.c.l.b16 %v380
        %v3005 = vunpack.c.l.b16 %v381
        %v3006 = vunpack.c.l.b16 %v382
        %v3007 = vunpack.c.l.b16 %v383
        %v3008 = vunpack.c.l.b16 %v384
        %v3009 = vunpack.c.l.b16 %v385
        %v3010 = vunpack.c.l.b16 %v386
        %v3011 = vunpack.c.l.b16 %v387
        %v3012 = vunpack.c.l.b16 %v388
        %v3013 = vunpack.c.l.b16 %v389
        %v3014 = vunpack.c.l.b16 %v390
        %v3015 = vunpack.c.l.b16 %v391
        %v3016 = vunpack.c.l.b16 %v392
        %v3017 = vunpack.c.l.b16 %v393
        %v3018 = vunpack.c.l.b16 %v394
        %v3019 = vunpack.c.l.b16 %v395
        %v3020 = vunpack.c.l.b16 %v396
        %v3021 = vunpack.c.l.b16 %v397
        %v3022 = vunpack.c.l.b16 %v398
        %v3023 = vunpack.c.l.b16 %v399
        %v3024 = vunpack.c.l.b16 %v400
        %v3025 = vunpack.c.l.b16 %v401
        %v3026 = vunpack.c.l.b16 %v402
        %v3027 = vunpack.c.l.b16 %v403
        %v3028 = vunpack.c.l.b16 %v404
        %v3029 = vunpack.c.l.b16 %v405
        %v3030 = vunpack.c.l.b16 %v406
        %v3031 = vunpack.c.l.b16 %v407
        %v3032 = vunpack.c.l.b16 %v408
        %v3033 = vunpack.c.l.b16 %v409
        %v3034 = vunpack.c.l.b16 %v410
        %v3035 = vunpack.c.l.b16 %v411
        %v3036 = vunpack.c.l.b16 %v412
        %v3037 = vunpack.c.l.b16 %v413
        %v3038 = vunpack.c.l.b16 %v414
        %v3039 = vunpack.c.l.b16 %v415
        %v3040 = vunpack.c.l.b16 %v416
        %v3041 = vunpack.c.l.b16 %v417
        %v3042 = vunpack.c.l.b16 %v418
        %v3043 = vunpack.c.l.b16 %v419
        %v3044 = vunpack.c.l.b16 %v420
        %v3045 = vunpack.c.l.b16 %v421
        %v3046 = vunpack.c.l.b16 %v422
        %v3047 = vunpack.c.l.b16 %v423
        %v3048 = vpack.c.b16 %v2969, %v2968
        %v3049 = vpack.c.b16 %v2971, %v2970
        %v3050 = vpack.c.b16 %v2973, %v2972
        %v3051 = vpack.c.b16 %v2975, %v2974
        %v3052 = vpack.c.b16 %v2977, %v2976
        %v3053 = vpack.c.b16 %v2979, %v2978
        %v3054 = vpack.c.b16 %v2981, %v2980
        %v3055 = vpack.c.b16 %v2983, %v2982
        %v3056 = vpack.c.b16 %v2985, %v2984
        %v3057 = vpack.c.b16 %v2987, %v2986
        %v3058 = vpack.c.b16 %v2989, %v2988
        %v3059 = vpack.c.b16 %v2991, %v2990
        %v3060 = vpack.c.b16 %v2993, %v2992
        %v3061 = vpack.c.b16 %v2995, %v2994
        %v3062 = vpack.c.b16 %v2997, %v2996
        %v3063 = vpack.c.b16 %v2999, %v2998
        %v3064 = vpack.c.b16 %v3001, %v3000
        %v3065 = vpack.c.b16 %v3003, %v3002
        %v3066 = vpack.c.b16 %v3005, %v3004
        %v3067 = vpack.c.b16 %v3007, %v3006
        %v3068 = vpack.c.b16 %v3009, %v3008
        %v3069 = vpack.c.b16 %v3011, %v3010
        %v3070 = vpack.c.b16 %v3013, %v3012
        %v3071 = vpack.c.b16 %v3015, %v3014
        %v3072 = vpack.c.b16 %v3017, %v3016
        %v3073 = vpack.c.b16 %v3019, %v3018
        %v3074 = vpack.c.b16 %v3021, %v3020
        %v3075 = vpack.c.b16 %v3023, %v3022
        %v3076 = vpack.c.b16 %v3025, %v3024
        %v3077 = vpack.c.b16 %v3027, %v3026
        %v3078 = vpack.c.b16 %v3029, %v3028
        %v3079 = vpack.c.b16 %v3031, %v3030
        %v3080 = vpack.c.b16 %v3033, %v3032
        %v3081 = vpack.c.b16 %v3035, %v3034
        %v3082 = vpack.c.b16 %v3037, %v3036
        %v3083 = vpack.c.b16 %v3039, %v3038
        %v3084 = vpack.c.b16 %v3041, %v3040
        %v3085 = vpack.c.b16 %v3043, %v3042
        %v3086 = vpack.c.b16 %v3045, %v3044
        %v3087 = vpack.c.b16 %v3047, %v3046
        %3128 = vmatpush.bf16.msra.mxu0 %v3055
        %3129 = vmatpush.bf16.msra.mxu0 %v3054
        %3130 = vmatpush.bf16.msra.mxu0 %v3053
        %3131 = vmatpush.bf16.msra.mxu0 %v3052
        %3132 = vmatpush.bf16.msra.mxu0 %v3051
        %3133 = vmatpush.bf16.msra.mxu0 %v3050
        %3134 = vmatpush.bf16.msra.mxu0 %v3049
        %3135 = vmatpush.bf16.msra.mxu0 %v3048
        %3136 = vmatmul.bf16.gmra.mxu0 %v2882
        %v3137 = vpop.f32.mrf.mxu0
        %v3138 = vadd.f32 %v2887, %v3137
        %v3139 = vpop.f32.mrf.mxu0
        %3140 = vdwg.mxu0
        %3141 = vmatpush.bf16.msra.mxu0 %v3063
        %3142 = vmatpush.bf16.msra.mxu0 %v3062
        %3143 = vmatpush.bf16.msra.mxu0 %v3061
        %3144 = vmatpush.bf16.msra.mxu0 %v3060
        %3145 = vmatpush.bf16.msra.mxu0 %v3059
        %3146 = vmatpush.bf16.msra.mxu0 %v3058
        %3147 = vmatpush.bf16.msra.mxu0 %v3057
        %3148 = vmatpush.bf16.msra.mxu0 %v3056
        %3149 = vmatmul.bf16.gmra.mxu0 %v2883
        %v3150 = vpop.f32.mrf.mxu0
        %v3151 = vadd.f32 %v3138, %v3150
        %v3152 = vpop.f32.mrf.mxu0
        %3153 = vdwg.mxu0
        %3154 = vmatpush.bf16.msra.mxu0 %v3071
        %3155 = vmatpush.bf16.msra.mxu0 %v3070
        %3156 = vmatpush.bf16.msra.mxu0 %v3069
        %3157 = vmatpush.bf16.msra.mxu0 %v3068
        %3158 = vmatpush.bf16.msra.mxu0 %v3067
        %3159 = vmatpush.bf16.msra.mxu0 %v3066
        %3160 = vmatpush.bf16.msra.mxu0 %v3065
        %3161 = vmatpush.bf16.msra.mxu0 %v3064
        %3162 = vmatmul.bf16.gmra.mxu0 %v2884
        %v3163 = vpop.f32.mrf.mxu0
        %v3164 = vadd.f32 %v3151, %v3163
        %v3165 = vpop.f32.mrf.mxu0
        %3166 = vdwg.mxu0
        %3167 = vmatpush.bf16.msra.mxu0 %v3079
        %3168 = vmatpush.bf16.msra.mxu0 %v3078
        %3169 = vmatpush.bf16.msra.mxu0 %v3077
        %3170 = vmatpush.bf16.msra.mxu0 %v3076
        %3171 = vmatpush.bf16.msra.mxu0 %v3075
        %3172 = vmatpush.bf16.msra.mxu0 %v3074
        %3173 = vmatpush.bf16.msra.mxu0 %v3073
        %3174 = vmatpush.bf16.msra.mxu0 %v3072
        %3175 = vmatmul.bf16.gmra.mxu0 %v2885
        %v3176 = vpop.f32.mrf.mxu0
        %v3177 = vadd.f32 %v3164, %v3176
        %v3178 = vpop.f32.mrf.mxu0
        %3179 = vdwg.mxu0
        %3180 = vmatpush.bf16.msra.mxu0 %v3087
        %3181 = vmatpush.bf16.msra.mxu0 %v3086
        %3182 = vmatpush.bf16.msra.mxu0 %v3085
        %3183 = vmatpush.bf16.msra.mxu0 %v3084
        %3184 = vmatpush.bf16.msra.mxu0 %v3083
        %3185 = vmatpush.bf16.msra.mxu0 %v3082
        %3186 = vmatpush.bf16.msra.mxu0 %v3081
        %3187 = vmatpush.bf16.msra.mxu0 %v3080
        %3188 = vmatmul.bf16.gmra.mxu0 %v2886
        %v3189 = vpop.f32.mrf.mxu0
        %v3190 = vadd.f32 %v3177, %v3189
        %v3191 = vpop.f32.mrf.mxu0
        %3192 = vdwg.mxu0
        %v3193 = vpack.c.bf16 %v3190, %v3190
        %v3194 = vperm.slane %v459, 0
        %v3211 = vunpack.c.l.b16 %v424
        %v3212 = vunpack.c.l.b16 %v425
        %v3213 = vunpack.c.l.b16 %v426
        %v3214 = vunpack.c.l.b16 %v427
        %v3215 = vunpack.c.l.b16 %v428
        %v3216 = vunpack.c.l.b16 %v429
        %v3217 = vunpack.c.l.b16 %v430
        %v3218 = vunpack.c.l.b16 %v431
        %v3219 = vunpack.c.l.b16 %v432
        %v3220 = vunpack.c.l.b16 %v433
        %v3221 = vunpack.c.l.b16 %v434
        %v3222 = vunpack.c.l.b16 %v435
        %v3223 = vunpack.c.l.b16 %v436
        %v3224 = vunpack.c.l.b16 %v437
        %v3225 = vunpack.c.l.b16 %v438
        %v3226 = vunpack.c.l.b16 %v439
        %v3227 = vpack.c.b16 %v3212, %v3211
        %v3228 = vpack.c.b16 %v3214, %v3213
        %v3229 = vpack.c.b16 %v3216, %v3215
        %v3230 = vpack.c.b16 %v3218, %v3217
        %v3231 = vpack.c.b16 %v3220, %v3219
        %v3232 = vpack.c.b16 %v3222, %v3221
        %v3233 = vpack.c.b16 %v3224, %v3223
        %v3234 = vpack.c.b16 %v3226, %v3225
        %3243 = vmatpush.bf16.msra.mxu0 %v3234
        %3244 = vmatpush.bf16.msra.mxu0 %v3233
        %3245 = vmatpush.bf16.msra.mxu0 %v3232
        %3246 = vmatpush.bf16.msra.mxu0 %v3231
        %3247 = vmatpush.bf16.msra.mxu0 %v3230
        %3248 = vmatpush.bf16.msra.mxu0 %v3229
        %3249 = vmatpush.bf16.msra.mxu0 %v3228
        %3250 = vmatpush.bf16.msra.mxu0 %v3227
        %3251 = vmatmul.bf16.gmra.mxu0 %v3193
        %v3252 = vpop.f32.mrf.mxu0
        %v3253 = vadd.f32 %v3194, %v3252
        %v3254 = vpop.f32.mrf.mxu0
        %3255 = vdwg.mxu0
        %v3256 = vpack.c.bf16 %v3253, %v3253
        %v3257 = vperm.slane %v460, 0
        %v3274 = vunpack.c.l.b16 %v440
        %v3275 = vunpack.c.l.b16 %v441
        %v3276 = vunpack.c.l.b16 %v442
        %v3277 = vunpack.c.l.b16 %v443
        %v3278 = vunpack.c.l.b16 %v444
        %v3279 = vunpack.c.l.b16 %v445
        %v3280 = vunpack.c.l.b16 %v446
        %v3281 = vunpack.c.l.b16 %v447
        %v3282 = vunpack.c.l.b16 %v448
        %v3283 = vunpack.c.l.b16 %v449
        %v3284 = vunpack.c.l.b16 %v450
        %v3285 = vunpack.c.l.b16 %v451
        %v3286 = vunpack.c.l.b16 %v452
        %v3287 = vunpack.c.l.b16 %v453
        %v3288 = vunpack.c.l.b16 %v454
        %v3289 = vunpack.c.l.b16 %v455
        %v3290 = vpack.c.b16 %v3275, %v3274
        %v3291 = vpack.c.b16 %v3277, %v3276
        %v3292 = vpack.c.b16 %v3279, %v3278
        %v3293 = vpack.c.b16 %v3281, %v3280
        %v3294 = vpack.c.b16 %v3283, %v3282
        %v3295 = vpack.c.b16 %v3285, %v3284
        %v3296 = vpack.c.b16 %v3287, %v3286
        %v3297 = vpack.c.b16 %v3289, %v3288
        %3306 = vmatpush.bf16.msra.mxu0 %v3297
        %3307 = vmatpush.bf16.msra.mxu0 %v3296
        %3308 = vmatpush.bf16.msra.mxu0 %v3295
        %3309 = vmatpush.bf16.msra.mxu0 %v3294
        %3310 = vmatpush.bf16.msra.mxu0 %v3293
        %3311 = vmatpush.bf16.msra.mxu0 %v3292
        %3312 = vmatpush.bf16.msra.mxu0 %v3291
        %3313 = vmatpush.bf16.msra.mxu0 %v3290
        %3314 = vmatmul.bf16.gmra.mxu0 %v3256
        %v3315 = vpop.f32.mrf.mxu0
        %v3316 = vadd.f32 %v3257, %v3315
        %v3317 = vpop.f32.mrf.mxu0
        %3318 = vdwg.mxu0
        %3319 = vst [vmem:[%s193] sm:$0xff] %v3316
        %s3320 = sand.u32 %s115, 1
        %s3321 = scalar_lea.sflag [#allocation3], %s3320
        %s3322 = sand.u32 %s115, 1
        %s3323 = smul.addr %s3322, 8
        %s3324 = scalar_lea.vmem [#allocation2], %s3323
        // Predicated region
        $region37: #{lenet_forward.1} parent=35 // pred_check
          %p3325 = pneg %p125
        $region38: #{lenet_forward.1} parent=35 // pred_check_branch
          %3327 = sbr.rel (%p3325) target = $region40
        $region39: #{lenet_forward.1} parent=35 // pred_region
          %3329 = vsyncadd %s3321, 0
          %s3330 = smul.addr %s18, 8
          %s3331 = scalar_lea.hbm %s4, %s3330
          %s3333 = sshll.u32 %s3324, 4
          %s3334 = int_to_ptr.vmem [resolvable:$true] %s3333
          %s3335 = sshll.u32 %s3331, 4
          %s3336 = int_to_ptr.hbm [resolvable:$true] %s3335
          %3338 = dma.vmem_to_hbm [thread:$0]  %s3334, 128, %s3336, %s3321
        $region40: #{lenet_forward.1} parent=35 // pred_fallthru
          _
      $region36: #{lenet_forward.1} parent=5 // pred_fallthru
        _
      %p3339 = scmp.le.s32.totalorder 2, %s13
      // Predicated region
      $region41: #{lenet_forward.1} parent=5 // pred_check
        %p3340 = pneg %p3339
      $region42: #{lenet_forward.1} parent=5 // pred_check_branch
        %3342 = sbr.rel (%p3340) target = $region44
      $region43: #{lenet_forward.1} parent=5 // pred_region
        %s3343 = ssub.s32 %s13, 2
        // Predicated region
        $region45: #{lenet_forward.1} parent=43 // pred_check
          %p3344 = pneg %p131
        $region46: #{lenet_forward.1} parent=43 // pred_check_branch
          %3346 = sbr.rel (%p3344) target = $region48
        $region47: #{lenet_forward.1} parent=43 // pred_region
          %s3347 = sand.u32 %s116, 1
          %s3348 = scalar_lea.sflag [#allocation3], %s3347
          %s3349 = sand.u32 %s116, 1
          %s3350 = smul.addr %s3349, 8
          %s3351 = scalar_lea.vmem [#allocation2], %s3350
          %3353 = dma.done %s3348, 128
        $region48: #{lenet_forward.1} parent=43 // pred_fallthru
          _
      $region44: #{lenet_forward.1} parent=5 // pred_fallthru
        _
    $region6: #{lenet_forward.1} parent=1 // loop_footer
      %s17 = sadd.s32 1, %s13
    $region7: #{lenet_forward.1} parent=1 // loop_footer_branch
      %12 = sbr.rel target = $region3
    $region8: #{lenet_forward.1} parent=1 // loop_exit
      _
    %3354 = vsyncpa [#allocation3], 1
    %s3355 = scalar_lea.sflag [#allocation3], 1
    %3356 = vsyncpa %s3355, 1

</llo_original>
